<compile_context>
chip_gen: v6e
topology: v6e:2x2x1
jax: 0.10.0
libtpu: 0.0.40
codegen_flags: <defaults>
</compile_context>

<pallas_src>
import functools

import jax
import jax.numpy as jnp
from jax.experimental import pallas as pl
from jax.experimental.pallas import tpu as pltpu


def _mha_fusion_kernel(f1_ref, f2_ref, w1_ref, b1_ref, w2_ref, b2_ref,
                       wo_ref, bo_ref, out_ref, *scratch,
                       num_heads, head_dim, approx_recip, direct_proj):
    """One batch tile. Weights are VMEM-resident (constant index_maps)."""
    D = num_heads * head_dim

    def qkv(x_ref, w_ref, b_ref):
        # MXU matmul in compute dtype (bf16 by default), f32 accumulation,
        # f32 bias add (biases are intentionally kept in f32).
        y = jnp.dot(x_ref[...], w_ref[...], preferred_element_type=jnp.float32)
        return y + b_ref[...]

    qkv1 = qkv(f1_ref, w1_ref, b1_ref)   # (TB, 3D) f32 = [Q1 | K1 | V1] (Q pre-scaled)
    qkv2 = qkv(f2_ref, w2_ref, b2_ref)   # (TB, 3D) f32 = [Q2 | K2 | V2]

    Q1, K1, V1 = qkv1[:, :D], qkv1[:, D:2 * D], qkv1[:, 2 * D:]
    Q2, K2, V2 = qkv2[:, :D], qkv2[:, D:2 * D], qkv2[:, 2 * D:]

    def head_outputs(Q, K, V):
        # Per-sample attention over the tiny head axis, statically unrolled;
        # everything stays in the 2-D (TB, D) lane layout, scale already in Q.
        outs = []
        for i in range(num_heads):
            qi = Q[:, i * head_dim:(i + 1) * head_dim]                      # (TB, hd)
            scores = [jnp.sum(qi * K[:, j * head_dim:(j + 1) * head_dim],
                              axis=-1, keepdims=True)
                      for j in range(num_heads)]                            # H x (TB, 1)
            m = scores[0]
            for s in scores[1:]:
                m = jnp.maximum(m, s)
            exps = [jnp.exp(s - m) for s in scores]
            denom = exps[0]
            for e in exps[1:]:
                denom = denom + e
            inv = pl.reciprocal(denom, approx=approx_recip)
            acc = (exps[0] * inv) * V[:, :head_dim]
            for j in range(1, num_heads):
                acc = acc + (exps[j] * inv) * V[:, j * head_dim:(j + 1) * head_dim]
            outs.append(acc)                                                # (TB, hd) f32
        return outs

    # fused layout = [fused_f1 heads | fused_f2 heads], head h at lanes h*hd.
    heads = head_outputs(Q1, K2, V2) + head_outputs(Q2, K1, V1)
    cd = wo_ref.dtype

    if direct_proj:
        # head_dim % 128 == 0: project each per-head slab straight into the
        # output accumulator -> no (TB, 2D) scratch round trip, every matmul
        # keeps K = head_dim >= 128 on the MXU, all slices lane-aligned.
        out = None
        for h, acc in enumerate(heads):
            contrib = jnp.dot(acc.astype(cd),
                              wo_ref[pl.ds(h * head_dim, head_dim), :],
                              preferred_element_type=jnp.float32)
            out = contrib if out is None else out + contrib
        out_ref[...] = (out + bo_ref[...]).astype(out_ref.dtype)
    else:
        # Small head_dim: assemble the fused slab in a compute-dtype scratch
        # (half the VMEM / cast traffic of f32) and run one wide matmul.
        fused_ref, = scratch
        for h, acc in enumerate(heads):
            fused_ref[:, h * head_dim:(h + 1) * head_dim] = acc.astype(fused_ref.dtype)
        out = jnp.dot(fused_ref[...], wo_ref[...],
                      preferred_element_type=jnp.float32)
        out_ref[...] = (out + bo_ref[...]).astype(out_ref.dtype)


def _prepare_params(params, D, num_heads, compute_dtype):
    """params in PyTorch convention: w=(out,in), b=(out,).  Returns fused,
    pre-transposed, pre-scaled, lane-padded operands.  Weights are cast to
    compute_dtype (bf16 by default, MXU-native); biases stay f32."""
    (wq1, bq1), (wk2, bk2), (wv2, bv2), (wq2, bq2), (wk1, bk1), (wv1, bv1), (wo, bo) = params
    head_dim = D // num_heads
    scale = 1.0 / (head_dim ** 0.5)
    f32 = jnp.float32

    wq1s, bq1s = jnp.asarray(wq1, f32) * scale, jnp.asarray(bq1, f32) * scale
    wq2s, bq2s = jnp.asarray(wq2, f32) * scale, jnp.asarray(bq2, f32) * scale

    # Fused QKV weights, transposed to (in, out); columns = [Q | K | V].
    w1 = jnp.concatenate([wq1s.T, jnp.asarray(wk1, f32).T, jnp.asarray(wv1, f32).T], axis=1)
    b1 = jnp.concatenate([bq1s, jnp.asarray(bk1, f32), jnp.asarray(bv1, f32)]).reshape(1, -1)
    w2 = jnp.concatenate([wq2s.T, jnp.asarray(wk2, f32).T, jnp.asarray(wv2, f32).T], axis=1)
    b2 = jnp.concatenate([bq2s, jnp.asarray(bk2, f32), jnp.asarray(bv2, f32)]).reshape(1, -1)

    # Output projection: transpose; zero-pad columns only if 2D is not already
    # a 128-lane multiple (no wasted HBM writeback otherwise).
    two_d = 2 * D
    n_pad = ((two_d + 127) // 128) * 128
    wo_t = jnp.asarray(wo, f32).T                 # (2D, 2D)
    bo_r = jnp.asarray(bo, f32).reshape(1, -1)    # (1, 2D)
    if n_pad != two_d:
        wo_t = jnp.pad(wo_t, ((0, 0), (0, n_pad - two_d)))
        bo_r = jnp.pad(bo_r, ((0, 0), (0, n_pad - two_d)))

    cd = compute_dtype
    return w1.astype(cd), b1, w2.astype(cd), b2, wo_t.astype(cd), bo_r, n_pad


def _vmem_budget_cap():
    """Per-generation cap on the scoped-VMEM request (v7x: 64 MiB / TC)."""
    try:
        info = pltpu.get_tpu_info()
        cap = int(getattr(info, "vmem_capacity_bytes", 128 * 2 ** 20))
    except Exception:
        cap = 64 * 2 ** 20                        # conservative (v7x per-TC)
    return max(16 * 2 ** 20, min(100 * 2 ** 20, int(cap * 0.8)))


def multi_head_attention_fusion(f1, f2, params, num_heads=2,
                                compute_dtype=jnp.bfloat16,
                                approx_reciprocal=None,
                                block_batch=None):
    B, D = f1.shape
    assert D % num_heads == 0, "input_dim must be divisible by num_heads"
    head_dim = D // num_heads
    two_d = 2 * D
    direct_proj = (head_dim % 128 == 0)

    # Approximate EUP reciprocal only when the matmul path is already low-precision.
    if approx_reciprocal is None:
        approx_reciprocal = jnp.dtype(compute_dtype) != jnp.dtype(jnp.float32)

    w1, b1, w2, b2, wo_p, bo_p, n_pad = _prepare_params(params, D, num_heads, compute_dtype)
    f1c = jnp.asarray(f1).astype(compute_dtype)
    f2c = jnp.asarray(f2).astype(compute_dtype)

    # --- batch tile: target >= 4 grid steps when B allows (feeds both v7x
    # TensorCores + the DMA pipeline); rows a multiple of 8; smaller default
    # tile for large D.
    if block_batch is None:
        block_batch = 256 if D >= 1024 else 512
    if B <= 8:
        tb = B                                     # full-dim block (legal)
    else:
        tb = min(block_batch, max(8, ((pl.cdiv(B, 4) + 7) // 8) * 8))

    cd_bytes = jnp.dtype(compute_dtype).itemsize
    cap = _vmem_budget_cap()

    def vmem_need(t):
        # Single-buffered resident weights + f32 biases.
        weights = (2 * D * 3 * D + two_d * n_pad) * cd_bytes + (6 * D + n_pad) * 4
        # Double-buffered activation input tiles + f32 output tiles.
        acts = 2 * (2 * t * D * cd_bytes) + 2 * (t * n_pad * 4)
        # In-kernel temporaries: two (t,3D) f32 qkv slabs, the f32 pre-store
        # output, ~one (t,2D) f32 worth of per-head temporaries.
        tmps = 2 * t * 3 * D * 4 + t * n_pad * 4 + 2 * t * two_d * 4
        scratch = 0 if direct_proj else t * two_d * cd_bytes
        return int(1.5 * (weights + acts + tmps + scratch))

    # Auto-shrink the batch tile if the estimate would blow the per-gen cap.
    while tb > 8 and vmem_need(tb) > cap:
        new_tb = max(8, ((tb // 2) // 8) * 8)
        if new_tb == tb:
            break
        tb = new_tb

    grid = (pl.cdiv(B, tb),)
    vmem_limit = int(min(cap, max(32 * 2 ** 20, vmem_need(tb))))

    kernel = functools.partial(_mha_fusion_kernel, num_heads=num_heads,
                               head_dim=head_dim,
                               approx_recip=bool(approx_reciprocal),
                               direct_proj=direct_proj)

    flops = 4 * B * D * 3 * D + 2 * B * two_d * n_pad + 8 * B * num_heads * num_heads * head_dim
    bytes_accessed = (2 * B * D * cd_bytes + B * n_pad * 4
                      + (2 * D * 3 * D + two_d * n_pad) * cd_bytes + (6 * D + n_pad) * 4)
    cost = pl.CostEstimate(flops=int(flops),
                           transcendentals=int(2 * B * num_heads * num_heads),
                           bytes_accessed=int(bytes_accessed))

    scratch_shapes = [] if direct_proj else [pltpu.VMEM((tb, two_d), compute_dtype)]

    def run(single_buffer_weights):
        def resident(shape):
            if single_buffer_weights:
                # Constant index_map -> never re-DMA'd; single buffer frees
                # the 2x weight footprint default double-buffering would cost.
                return pl.BlockSpec(shape, lambda i: (0, 0),
                                    pipeline_mode=pl.Buffered(1))
            return pl.BlockSpec(shape, lambda i: (0, 0))

        in_specs = [
            pl.BlockSpec((tb, D), lambda i: (i, 0)),          # f1 tile
            pl.BlockSpec((tb, D), lambda i: (i, 0)),          # f2 tile
            resident((D, 3 * D)),                             # W1 qkv (resident)
            resident((1, 3 * D)),                             # b1 (f32)
            resident((D, 3 * D)),                             # W2 qkv (resident)
            resident((1, 3 * D)),                             # b2 (f32)
            resident((two_d, n_pad)),                         # Wo (resident, lane padded)
            resident((1, n_pad)),                             # bo (f32)
        ]
        out_specs = pl.BlockSpec((tb, n_pad), lambda i: (i, 0))

        # NOTE: when B % tb != 0 the last grid step computes exp()/reciprocal
        # on garbage padding rows; those rows are masked on writeback and never
        # feed back into valid rows.
        return pl.pallas_call(
            kernel,
            grid=grid,
            in_specs=in_specs,
            out_specs=out_specs,
            out_shape=jax.ShapeDtypeStruct((B, n_pad), jnp.float32),
            scratch_shapes=scratch_shapes,
            compiler_params=pltpu.CompilerParams(
                dimension_semantics=("parallel",),
                vmem_limit_bytes=vmem_limit),
            cost_estimate=cost,
        )(f1c, f2c, w1, b1, w2, b2, wo_p, bo_p)

    try:
        out_padded = run(True)       # single-buffered resident weights
    except Exception:                # fallback if pipeline_mode/Buffered(1) unsupported
        out_padded = run(False)

    return out_padded[:, :two_d]


def _reference(f1, f2, params, num_heads=2):
    (wq1, bq1), (wk2, bk2), (wv2, bv2), (wq2, bq2), (wk1, bk1), (wv1, bv1), (wo, bo) = params
    B, D = f1.shape
    hd = D // num_heads

    def lin(x, w, b):
        return x @ w.T + b

    def split(x):
        return x.reshape(B, num_heads, hd)

    Q1, K2, V2 = split(lin(f1, wq1, bq1)), split(lin(f2, wk2, bk2)), split(lin(f2, wv2, bv2))
    s1 = jnp.einsum('bih,bjh->bij', Q1, K2) / hd ** 0.5
    fused1 = jnp.einsum('bij,bjh->bih', jax.nn.softmax(s1, axis=-1), V2).reshape(B, D)

    Q2, K1, V1 = split(lin(f2, wq2, bq2)), split(lin(f1, wk1, bk1)), split(lin(f1, wv1, bv1))
    s2 = jnp.einsum('bih,bjh->bij', Q2, K1) / hd ** 0.5
    fused2 = jnp.einsum('bij,bjh->bih', jax.nn.softmax(s2, axis=-1), V1).reshape(B, D)

    fused = jnp.concatenate([fused1, fused2], axis=-1)
    return lin(fused, wo, bo)


if __name__ == "__main__":
    H = 2

    def make_linear(kw, kb, out_d, in_d):
        w = jax.random.normal(kw, (out_d, in_d), jnp.float32) * 0.1
        b = jax.random.normal(kb, (out_d,), jnp.float32) * 0.1
        return w, b

    def build_params(key, D):
        keys = jax.random.split(key, 14)
        params, k = [], 0
        for out_d, in_d in [(D, D)] * 6 + [(2 * D, 2 * D)]:
            params.append(make_linear(keys[k], keys[k + 1], out_d, in_d))
            k += 2
        return params

    key = jax.random.PRNGKey(0)
    kf1, kf2, kp = jax.random.split(key, 3)

    # --- small shape, f32 compute (exact reciprocal by default): tight check ---
    B, D = 2, 32
    f1 = jax.random.normal(kf1, (B, D), jnp.float32)
    f2 = jax.random.normal(kf2, (B, D), jnp.float32)
    params = build_params(kp, D)

    out = multi_head_attention_fusion(f1, f2, params, num_heads=H,
                                      compute_dtype=jnp.float32)
    out = jax.block_until_ready(out)
    ref = _reference(f1, f2, params, num_heads=H)
    assert out.shape == (B, 2 * D)
    assert jnp.allclose(out, ref, atol=1e-4, rtol=1e-4), \
        f"f32 max abs err = {float(jnp.max(jnp.abs(out - ref)))}"

    # --- larger batch: batch-tiled, pipelined path (grid >= 4) ---
    B2 = 1024
    f1b = jax.random.normal(jax.random.fold_in(kf1, 1), (B2, D), jnp.float32)
    f2b = jax.random.normal(jax.random.fold_in(kf2, 1), (B2, D), jnp.float32)
    out_b = multi_head_attention_fusion(f1b, f2b, params, num_heads=H,
                                        compute_dtype=jnp.float32)
    out_b = jax.block_until_ready(out_b)
    ref_b = _reference(f1b, f2b, params, num_heads=H)
    assert jnp.allclose(out_b, ref_b, atol=1e-4, rtol=1e-4), \
        f"tiled f32 max abs err = {float(jnp.max(jnp.abs(out_b - ref_b)))}"

    # --- default path: bf16 MXU operands, f32 softmax/acc, approx reciprocal ---
    out_bf16 = multi_head_attention_fusion(f1, f2, params, num_heads=H)
    out_bf16 = jax.block_until_ready(out_bf16)
    assert jnp.allclose(out_bf16, ref, atol=1e-1, rtol=5e-2), \
        f"bf16 max abs err = {float(jnp.max(jnp.abs(out_bf16 - ref)))}"

    # --- head_dim = 128: exercises the scratch-free direct projection path ---
    D3, B3 = 256, 64
    params3 = build_params(jax.random.fold_in(kp, 3), D3)
    f1d = jax.random.normal(jax.random.fold_in(kf1, 3), (B3, D3), jnp.float32)
    f2d = jax.random.normal(jax.random.fold_in(kf2, 3), (B3, D3), jnp.float32)
    out3 = multi_head_attention_fusion(f1d, f2d, params3, num_heads=H)
    out3 = jax.block_until_ready(out3)
    ref3 = _reference(f1d, f2d, params3, num_heads=H)
    err3 = float(jnp.max(jnp.abs(out3 - ref3)))
    scale3 = float(jnp.max(jnp.abs(ref3)))
    assert err3 <= 5e-2 * scale3 + 5e-2, \
        f"bf16 direct-proj err = {err3}, ref scale = {scale3}"

    print("KERNEL_OK")
</pallas_src>

<mosaic_0001>
module attributes {stable_mosaic.version = 11 : i64} {
  func.func @_mha_fusion_kernel(%arg0: i32, %arg1: memref<2x32xf32, #tpu.memory_space<vmem>>, %arg2: memref<2x32xf32, #tpu.memory_space<vmem>>, %arg3: memref<32x96xf32, #tpu.memory_space<vmem>>, %arg4: memref<1x96xf32, #tpu.memory_space<vmem>>, %arg5: memref<32x96xf32, #tpu.memory_space<vmem>>, %arg6: memref<1x96xf32, #tpu.memory_space<vmem>>, %arg7: memref<64x128xf32, #tpu.memory_space<vmem>>, %arg8: memref<1x128xf32, #tpu.memory_space<vmem>>, %arg9: memref<2x128xf32, #tpu.memory_space<vmem>>, %arg10: memref<2x64xf32, #tpu.memory_space<vmem>>) attributes {dimension_semantics = [#tpu.dimension_semantics<parallel>], iteration_bounds = array<i64: 1>, scalar_prefetch = 0 : i64, scratch_operands = 1 : i64, tpu.core_type = #tpu.core_type<tc>, window_params = [{transform_indices = @transform_0, window_bounds = array<i64: 2, 32>}, {transform_indices = @transform_1, window_bounds = array<i64: 2, 32>}, {pipeline_mode = #tpu.pipeline_mode<synchronous>, transform_indices = @transform_2, window_bounds = array<i64: 32, 96>}, {pipeline_mode = #tpu.pipeline_mode<synchronous>, transform_indices = @transform_3, window_bounds = array<i64: 1, 96>}, {pipeline_mode = #tpu.pipeline_mode<synchronous>, transform_indices = @transform_4, window_bounds = array<i64: 32, 96>}, {pipeline_mode = #tpu.pipeline_mode<synchronous>, transform_indices = @transform_5, window_bounds = array<i64: 1, 96>}, {pipeline_mode = #tpu.pipeline_mode<synchronous>, transform_indices = @transform_6, window_bounds = array<i64: 64, 128>}, {pipeline_mode = #tpu.pipeline_mode<synchronous>, transform_indices = @transform_7, window_bounds = array<i64: 1, 128>}, {transform_indices = @transform_8, window_bounds = array<i64: 2, 128>}]} {
    %c0 = arith.constant 0 : index
    %c0_0 = arith.constant 0 : index
    %0 = vector.load %arg1[%c0, %c0_0] : memref<2x32xf32, #tpu.memory_space<vmem>>, vector<2x32xf32>
    %c0_1 = arith.constant 0 : index
    %c0_2 = arith.constant 0 : index
    %1 = vector.load %arg3[%c0_1, %c0_2] : memref<32x96xf32, #tpu.memory_space<vmem>>, vector<32x96xf32>
    %cst = arith.constant dense<0.000000e+00> : vector<2x96xf32>
    %2 = tpu.matmul %0, %1, %cst {dimension_numbers = #tpu.dot_dimension_numbers<[1], [0], [0], [1], [0, 0, 1, 1], [], []>} : vector<2x32xf32>, vector<32x96xf32>, vector<2x96xf32> -> vector<2x96xf32>
    %c0_3 = arith.constant 0 : index
    %c0_4 = arith.constant 0 : index
    %3 = vector.load %arg4[%c0_3, %c0_4] : memref<1x96xf32, #tpu.memory_space<vmem>>, vector<1x96xf32>
    %4 = vector.broadcast %3 : vector<1x96xf32> to vector<2x96xf32>
    %5 = arith.addf %2, %4 : vector<2x96xf32>
    %c0_5 = arith.constant 0 : index
    %c0_6 = arith.constant 0 : index
    %6 = vector.load %arg2[%c0_5, %c0_6] : memref<2x32xf32, #tpu.memory_space<vmem>>, vector<2x32xf32>
    %c0_7 = arith.constant 0 : index
    %c0_8 = arith.constant 0 : index
    %7 = vector.load %arg5[%c0_7, %c0_8] : memref<32x96xf32, #tpu.memory_space<vmem>>, vector<32x96xf32>
    %cst_9 = arith.constant dense<0.000000e+00> : vector<2x96xf32>
    %8 = tpu.matmul %6, %7, %cst_9 {dimension_numbers = #tpu.dot_dimension_numbers<[1], [0], [0], [1], [0, 0, 1, 1], [], []>} : vector<2x32xf32>, vector<32x96xf32>, vector<2x96xf32> -> vector<2x96xf32>
    %c0_10 = arith.constant 0 : index
    %c0_11 = arith.constant 0 : index
    %9 = vector.load %arg6[%c0_10, %c0_11] : memref<1x96xf32, #tpu.memory_space<vmem>>, vector<1x96xf32>
    %10 = vector.broadcast %9 : vector<1x96xf32> to vector<2x96xf32>
    %11 = arith.addf %8, %10 : vector<2x96xf32>
    %12 = vector.extract_strided_slice %5 {offsets = [0, 0], sizes = [2, 32], strides = [1, 1]} : vector<2x96xf32> to vector<2x32xf32>
    %13 = vector.extract_strided_slice %5 {offsets = [0, 32], sizes = [2, 32], strides = [1, 1]} : vector<2x96xf32> to vector<2x32xf32>
    %14 = vector.extract_strided_slice %5 {offsets = [0, 64], sizes = [2, 32], strides = [1, 1]} : vector<2x96xf32> to vector<2x32xf32>
    %15 = vector.extract_strided_slice %11 {offsets = [0, 0], sizes = [2, 32], strides = [1, 1]} : vector<2x96xf32> to vector<2x32xf32>
    %16 = vector.extract_strided_slice %11 {offsets = [0, 32], sizes = [2, 32], strides = [1, 1]} : vector<2x96xf32> to vector<2x32xf32>
    %17 = vector.extract_strided_slice %11 {offsets = [0, 64], sizes = [2, 32], strides = [1, 1]} : vector<2x96xf32> to vector<2x32xf32>
    %18 = vector.extract_strided_slice %12 {offsets = [0, 0], sizes = [2, 16], strides = [1, 1]} : vector<2x32xf32> to vector<2x16xf32>
    %19 = vector.extract_strided_slice %16 {offsets = [0, 0], sizes = [2, 16], strides = [1, 1]} : vector<2x32xf32> to vector<2x16xf32>
    %20 = arith.mulf %18, %19 : vector<2x16xf32>
    %cst_12 = arith.constant dense<0.000000e+00> : vector<2xf32>
    %21 = vector.multi_reduction <add>, %20, %cst_12 [1] : vector<2x16xf32> to vector<2xf32>
    %22 = vector.shape_cast %21 : vector<2xf32> to vector<2x1xf32>
    %23 = vector.extract_strided_slice %16 {offsets = [0, 16], sizes = [2, 16], strides = [1, 1]} : vector<2x32xf32> to vector<2x16xf32>
    %24 = arith.mulf %18, %23 : vector<2x16xf32>
    %cst_13 = arith.constant dense<0.000000e+00> : vector<2xf32>
    %25 = vector.multi_reduction <add>, %24, %cst_13 [1] : vector<2x16xf32> to vector<2xf32>
    %26 = vector.shape_cast %25 : vector<2xf32> to vector<2x1xf32>
    %27 = arith.maximumf %22, %26 : vector<2x1xf32>
    %28 = arith.subf %22, %27 : vector<2x1xf32>
    %29 = math.exp %28 : vector<2x1xf32>
    %30 = arith.subf %26, %27 : vector<2x1xf32>
    %31 = math.exp %30 : vector<2x1xf32>
    %32 = arith.addf %29, %31 : vector<2x1xf32>
    %33 = tpu.reciprocal %32 : vector<2x1xf32> -> vector<2x1xf32>
    %34 = arith.mulf %29, %33 : vector<2x1xf32>
    %35 = vector.extract_strided_slice %17 {offsets = [0, 0], sizes = [2, 16], strides = [1, 1]} : vector<2x32xf32> to vector<2x16xf32>
    %36 = vector.broadcast %34 : vector<2x1xf32> to vector<2x16xf32>
    %37 = arith.mulf %36, %35 : vector<2x16xf32>
    %38 = arith.mulf %31, %33 : vector<2x1xf32>
    %39 = vector.extract_strided_slice %17 {offsets = [0, 16], sizes = [2, 16], strides = [1, 1]} : vector<2x32xf32> to vector<2x16xf32>
    %40 = vector.broadcast %38 : vector<2x1xf32> to vector<2x16xf32>
    %41 = arith.mulf %40, %39 : vector<2x16xf32>
    %42 = arith.addf %37, %41 : vector<2x16xf32>
    %43 = vector.extract_strided_slice %12 {offsets = [0, 16], sizes = [2, 16], strides = [1, 1]} : vector<2x32xf32> to vector<2x16xf32>
    %44 = vector.extract_strided_slice %16 {offsets = [0, 0], sizes = [2, 16], strides = [1, 1]} : vector<2x32xf32> to vector<2x16xf32>
    %45 = arith.mulf %43, %44 : vector<2x16xf32>
    %cst_14 = arith.constant dense<0.000000e+00> : vector<2xf32>
    %46 = vector.multi_reduction <add>, %45, %cst_14 [1] : vector<2x16xf32> to vector<2xf32>
    %47 = vector.shape_cast %46 : vector<2xf32> to vector<2x1xf32>
    %48 = vector.extract_strided_slice %16 {offsets = [0, 16], sizes = [2, 16], strides = [1, 1]} : vector<2x32xf32> to vector<2x16xf32>
    %49 = arith.mulf %43, %48 : vector<2x16xf32>
    %cst_15 = arith.constant dense<0.000000e+00> : vector<2xf32>
    %50 = vector.multi_reduction <add>, %49, %cst_15 [1] : vector<2x16xf32> to vector<2xf32>
    %51 = vector.shape_cast %50 : vector<2xf32> to vector<2x1xf32>
    %52 = arith.maximumf %47, %51 : vector<2x1xf32>
    %53 = arith.subf %47, %52 : vector<2x1xf32>
    %54 = math.exp %53 : vector<2x1xf32>
    %55 = arith.subf %51, %52 : vector<2x1xf32>
    %56 = math.exp %55 : vector<2x1xf32>
    %57 = arith.addf %54, %56 : vector<2x1xf32>
    %58 = tpu.reciprocal %57 : vector<2x1xf32> -> vector<2x1xf32>
    %59 = arith.mulf %54, %58 : vector<2x1xf32>
    %60 = vector.extract_strided_slice %17 {offsets = [0, 0], sizes = [2, 16], strides = [1, 1]} : vector<2x32xf32> to vector<2x16xf32>
    %61 = vector.broadcast %59 : vector<2x1xf32> to vector<2x16xf32>
    %62 = arith.mulf %61, %60 : vector<2x16xf32>
    %63 = arith.mulf %56, %58 : vector<2x1xf32>
    %64 = vector.extract_strided_slice %17 {offsets = [0, 16], sizes = [2, 16], strides = [1, 1]} : vector<2x32xf32> to vector<2x16xf32>
    %65 = vector.broadcast %63 : vector<2x1xf32> to vector<2x16xf32>
    %66 = arith.mulf %65, %64 : vector<2x16xf32>
    %67 = arith.addf %62, %66 : vector<2x16xf32>
    %68 = vector.extract_strided_slice %15 {offsets = [0, 0], sizes = [2, 16], strides = [1, 1]} : vector<2x32xf32> to vector<2x16xf32>
    %69 = vector.extract_strided_slice %13 {offsets = [0, 0], sizes = [2, 16], strides = [1, 1]} : vector<2x32xf32> to vector<2x16xf32>
    %70 = arith.mulf %68, %69 : vector<2x16xf32>
    %cst_16 = arith.constant dense<0.000000e+00> : vector<2xf32>
    %71 = vector.multi_reduction <add>, %70, %cst_16 [1] : vector<2x16xf32> to vector<2xf32>
    %72 = vector.shape_cast %71 : vector<2xf32> to vector<2x1xf32>
    %73 = vector.extract_strided_slice %13 {offsets = [0, 16], sizes = [2, 16], strides = [1, 1]} : vector<2x32xf32> to vector<2x16xf32>
    %74 = arith.mulf %68, %73 : vector<2x16xf32>
    %cst_17 = arith.constant dense<0.000000e+00> : vector<2xf32>
    %75 = vector.multi_reduction <add>, %74, %cst_17 [1] : vector<2x16xf32> to vector<2xf32>
    %76 = vector.shape_cast %75 : vector<2xf32> to vector<2x1xf32>
    %77 = arith.maximumf %72, %76 : vector<2x1xf32>
    %78 = arith.subf %72, %77 : vector<2x1xf32>
    %79 = math.exp %78 : vector<2x1xf32>
    %80 = arith.subf %76, %77 : vector<2x1xf32>
    %81 = math.exp %80 : vector<2x1xf32>
    %82 = arith.addf %79, %81 : vector<2x1xf32>
    %83 = tpu.reciprocal %82 : vector<2x1xf32> -> vector<2x1xf32>
    %84 = arith.mulf %79, %83 : vector<2x1xf32>
    %85 = vector.extract_strided_slice %14 {offsets = [0, 0], sizes = [2, 16], strides = [1, 1]} : vector<2x32xf32> to vector<2x16xf32>
    %86 = vector.broadcast %84 : vector<2x1xf32> to vector<2x16xf32>
    %87 = arith.mulf %86, %85 : vector<2x16xf32>
    %88 = arith.mulf %81, %83 : vector<2x1xf32>
    %89 = vector.extract_strided_slice %14 {offsets = [0, 16], sizes = [2, 16], strides = [1, 1]} : vector<2x32xf32> to vector<2x16xf32>
    %90 = vector.broadcast %88 : vector<2x1xf32> to vector<2x16xf32>
    %91 = arith.mulf %90, %89 : vector<2x16xf32>
    %92 = arith.addf %87, %91 : vector<2x16xf32>
    %93 = vector.extract_strided_slice %15 {offsets = [0, 16], sizes = [2, 16], strides = [1, 1]} : vector<2x32xf32> to vector<2x16xf32>
    %94 = vector.extract_strided_slice %13 {offsets = [0, 0], sizes = [2, 16], strides = [1, 1]} : vector<2x32xf32> to vector<2x16xf32>
    %95 = arith.mulf %93, %94 : vector<2x16xf32>
    %cst_18 = arith.constant dense<0.000000e+00> : vector<2xf32>
    %96 = vector.multi_reduction <add>, %95, %cst_18 [1] : vector<2x16xf32> to vector<2xf32>
    %97 = vector.shape_cast %96 : vector<2xf32> to vector<2x1xf32>
    %98 = vector.extract_strided_slice %13 {offsets = [0, 16], sizes = [2, 16], strides = [1, 1]} : vector<2x32xf32> to vector<2x16xf32>
    %99 = arith.mulf %93, %98 : vector<2x16xf32>
    %cst_19 = arith.constant dense<0.000000e+00> : vector<2xf32>
    %100 = vector.multi_reduction <add>, %99, %cst_19 [1] : vector<2x16xf32> to vector<2xf32>
    %101 = vector.shape_cast %100 : vector<2xf32> to vector<2x1xf32>
    %102 = arith.maximumf %97, %101 : vector<2x1xf32>
    %103 = arith.subf %97, %102 : vector<2x1xf32>
    %104 = math.exp %103 : vector<2x1xf32>
    %105 = arith.subf %101, %102 : vector<2x1xf32>
    %106 = math.exp %105 : vector<2x1xf32>
    %107 = arith.addf %104, %106 : vector<2x1xf32>
    %108 = tpu.reciprocal %107 : vector<2x1xf32> -> vector<2x1xf32>
    %109 = arith.mulf %104, %108 : vector<2x1xf32>
    %110 = vector.extract_strided_slice %14 {offsets = [0, 0], sizes = [2, 16], strides = [1, 1]} : vector<2x32xf32> to vector<2x16xf32>
    %111 = vector.broadcast %109 : vector<2x1xf32> to vector<2x16xf32>
    %112 = arith.mulf %111, %110 : vector<2x16xf32>
    %113 = arith.mulf %106, %108 : vector<2x1xf32>
    %114 = vector.extract_strided_slice %14 {offsets = [0, 16], sizes = [2, 16], strides = [1, 1]} : vector<2x32xf32> to vector<2x16xf32>
    %115 = vector.broadcast %113 : vector<2x1xf32> to vector<2x16xf32>
    %116 = arith.mulf %115, %114 : vector<2x16xf32>
    %117 = arith.addf %112, %116 : vector<2x16xf32>
    %c0_20 = arith.constant 0 : index
    %c0_21 = arith.constant 0 : index
    %118 = vector.load %arg10[%c0_20, %c0_21] : memref<2x64xf32, #tpu.memory_space<vmem>>, vector<2x16xf32>
    tpu.vector_store %arg10[%c0_20, %c0_21], %42 {strides = array<i32>} : memref<2x64xf32, #tpu.memory_space<vmem>>, vector<2x16xf32>,
    %c0_22 = arith.constant 0 : index
    %c16 = arith.constant 16 : index
    %119 = vector.load %arg10[%c0_22, %c16] : memref<2x64xf32, #tpu.memory_space<vmem>>, vector<2x16xf32>
    tpu.vector_store %arg10[%c0_22, %c16], %67 {strides = array<i32>} : memref<2x64xf32, #tpu.memory_space<vmem>>, vector<2x16xf32>,
    %c0_23 = arith.constant 0 : index
    %c32 = arith.constant 32 : index
    %120 = vector.load %arg10[%c0_23, %c32] : memref<2x64xf32, #tpu.memory_space<vmem>>, vector<2x16xf32>
    tpu.vector_store %arg10[%c0_23, %c32], %92 {strides = array<i32>} : memref<2x64xf32, #tpu.memory_space<vmem>>, vector<2x16xf32>,
    %c0_24 = arith.constant 0 : index
    %c48 = arith.constant 48 : index
    %121 = vector.load %arg10[%c0_24, %c48] : memref<2x64xf32, #tpu.memory_space<vmem>>, vector<2x16xf32>
    tpu.vector_store %arg10[%c0_24, %c48], %117 {strides = array<i32>} : memref<2x64xf32, #tpu.memory_space<vmem>>, vector<2x16xf32>,
    %c0_25 = arith.constant 0 : index
    %c0_26 = arith.constant 0 : index
    %122 = vector.load %arg10[%c0_25, %c0_26] : memref<2x64xf32, #tpu.memory_space<vmem>>, vector<2x64xf32>
    %c0_27 = arith.constant 0 : index
    %c0_28 = arith.constant 0 : index
    %123 = vector.load %arg7[%c0_27, %c0_28] : memref<64x128xf32, #tpu.memory_space<vmem>>, vector<64x128xf32>
    %cst_29 = arith.constant dense<0.000000e+00> : vector<2x128xf32>
    %124 = tpu.matmul %122, %123, %cst_29 {dimension_numbers = #tpu.dot_dimension_numbers<[1], [0], [0], [1], [0, 0, 1, 1], [], []>} : vector<2x64xf32>, vector<64x128xf32>, vector<2x128xf32> -> vector<2x128xf32>
    %c0_30 = arith.constant 0 : index
    %c0_31 = arith.constant 0 : index
    %125 = vector.load %arg8[%c0_30, %c0_31] : memref<1x128xf32, #tpu.memory_space<vmem>>, vector<1x128xf32>
    %126 = vector.broadcast %125 : vector<1x128xf32> to vector<2x128xf32>
    %127 = arith.addf %124, %126 : vector<2x128xf32>
    %c0_32 = arith.constant 0 : index
    %c0_33 = arith.constant 0 : index
    %128 = vector.load %arg9[%c0_32, %c0_33] : memref<2x128xf32, #tpu.memory_space<vmem>>, vector<2x128xf32>
    tpu.vector_store %arg9[%c0_32, %c0_33], %127 {strides = array<i32>} : memref<2x128xf32, #tpu.memory_space<vmem>>, vector<2x128xf32>,
    return
  }
  func.func @transform_0(%arg0: i32) -> (i32, i32) {
    %c0_i32 = arith.constant 0 : i32
    %c0_i32_0 = arith.constant 0 : i32
    return %arg0, %c0_i32 : i32, i32
  }
  func.func @transform_1(%arg0: i32) -> (i32, i32) {
    %c0_i32 = arith.constant 0 : i32
    %c0_i32_0 = arith.constant 0 : i32
    return %arg0, %c0_i32 : i32, i32
  }
  func.func @transform_2(%arg0: i32) -> (i32, i32) {
    %c0_i32 = arith.constant 0 : i32
    %c0_i32_0 = arith.constant 0 : i32
    %c0_i32_1 = arith.constant 0 : i32
    return %c0_i32, %c0_i32_0 : i32, i32
  }
  func.func @transform_3(%arg0: i32) -> (i32, i32) {
    %c0_i32 = arith.constant 0 : i32
    %c0_i32_0 = arith.constant 0 : i32
    %c0_i32_1 = arith.constant 0 : i32
    return %c0_i32, %c0_i32_0 : i32, i32
  }
  func.func @transform_4(%arg0: i32) -> (i32, i32) {
    %c0_i32 = arith.constant 0 : i32
    %c0_i32_0 = arith.constant 0 : i32
    %c0_i32_1 = arith.constant 0 : i32
    return %c0_i32, %c0_i32_0 : i32, i32
  }
  func.func @transform_5(%arg0: i32) -> (i32, i32) {
    %c0_i32 = arith.constant 0 : i32
    %c0_i32_0 = arith.constant 0 : i32
    %c0_i32_1 = arith.constant 0 : i32
    return %c0_i32, %c0_i32_0 : i32, i32
  }
  func.func @transform_6(%arg0: i32) -> (i32, i32) {
    %c0_i32 = arith.constant 0 : i32
    %c0_i32_0 = arith.constant 0 : i32
    %c0_i32_1 = arith.constant 0 : i32
    return %c0_i32, %c0_i32_0 : i32, i32
  }
  func.func @transform_7(%arg0: i32) -> (i32, i32) {
    %c0_i32 = arith.constant 0 : i32
    %c0_i32_0 = arith.constant 0 : i32
    %c0_i32_1 = arith.constant 0 : i32
    return %c0_i32, %c0_i32_0 : i32, i32
  }
  func.func @transform_8(%arg0: i32) -> (i32, i32) {
    %c0_i32 = arith.constant 0 : i32
    %c0_i32_0 = arith.constant 0 : i32
    return %arg0, %c0_i32 : i32, i32
  }
}

module attributes {stable_mosaic.version = 11 : i64} {
  func.func @_mha_fusion_kernel(%arg0: i32, %arg1: memref<2x32xf32, #tpu.memory_space<vmem>>, %arg2: memref<2x32xf32, #tpu.memory_space<vmem>>, %arg3: memref<32x96xf32, #tpu.memory_space<vmem>>, %arg4: memref<1x96xf32, #tpu.memory_space<vmem>>, %arg5: memref<32x96xf32, #tpu.memory_space<vmem>>, %arg6: memref<1x96xf32, #tpu.memory_space<vmem>>, %arg7: memref<64x128xf32, #tpu.memory_space<vmem>>, %arg8: memref<1x128xf32, #tpu.memory_space<vmem>>, %arg9: memref<2x128xf32, #tpu.memory_space<vmem>>, %arg10: memref<2x64xf32, #tpu.memory_space<vmem>>) attributes {dimension_semantics = [#tpu.dimension_semantics<parallel>], iteration_bounds = array<i64: 1>, scalar_prefetch = 0 : i64, scratch_operands = 1 : i64, tpu.core_type = #tpu.core_type<tc>, window_params = [{transform_indices = @transform_0, window_bounds = array<i64: 2, 32>}, {transform_indices = @transform_1, window_bounds = array<i64: 2, 32>}, {pipeline_mode = #tpu.pipeline_mode<synchronous>, transform_indices = @transform_2, window_bounds = array<i64: 32, 96>}, {pipeline_mode = #tpu.pipeline_mode<synchronous>, transform_indices = @transform_3, window_bounds = array<i64: 1, 96>}, {pipeline_mode = #tpu.pipeline_mode<synchronous>, transform_indices = @transform_4, window_bounds = array<i64: 32, 96>}, {pipeline_mode = #tpu.pipeline_mode<synchronous>, transform_indices = @transform_5, window_bounds = array<i64: 1, 96>}, {pipeline_mode = #tpu.pipeline_mode<synchronous>, transform_indices = @transform_6, window_bounds = array<i64: 64, 128>}, {pipeline_mode = #tpu.pipeline_mode<synchronous>, transform_indices = @transform_7, window_bounds = array<i64: 1, 128>}, {transform_indices = @transform_8, window_bounds = array<i64: 2, 128>}]} {
    %c0 = arith.constant 0 : index
    %c0_0 = arith.constant 0 : index
    %0 = vector.load %arg1[%c0, %c0_0] : memref<2x32xf32, #tpu.memory_space<vmem>>, vector<2x32xf32>
    %c0_1 = arith.constant 0 : index
    %c0_2 = arith.constant 0 : index
    %1 = vector.load %arg3[%c0_1, %c0_2] : memref<32x96xf32, #tpu.memory_space<vmem>>, vector<32x96xf32>
    %cst = arith.constant dense<0.000000e+00> : vector<2x96xf32>
    %2 = tpu.matmul %0, %1, %cst {dimension_numbers = #tpu.dot_dimension_numbers<[1], [0], [0], [1], [0, 0, 1, 1], [], []>} : vector<2x32xf32>, vector<32x96xf32>, vector<2x96xf32> -> vector<2x96xf32>
    %c0_3 = arith.constant 0 : index
    %c0_4 = arith.constant 0 : index
    %3 = vector.load %arg4[%c0_3, %c0_4] : memref<1x96xf32, #tpu.memory_space<vmem>>, vector<1x96xf32>
    %4 = vector.broadcast %3 : vector<1x96xf32> to vector<2x96xf32>
    %5 = arith.addf %2, %4 : vector<2x96xf32>
    %c0_5 = arith.constant 0 : index
    %c0_6 = arith.constant 0 : index
    %6 = vector.load %arg2[%c0_5, %c0_6] : memref<2x32xf32, #tpu.memory_space<vmem>>, vector<2x32xf32>
    %c0_7 = arith.constant 0 : index
    %c0_8 = arith.constant 0 : index
    %7 = vector.load %arg5[%c0_7, %c0_8] : memref<32x96xf32, #tpu.memory_space<vmem>>, vector<32x96xf32>
    %cst_9 = arith.constant dense<0.000000e+00> : vector<2x96xf32>
    %8 = tpu.matmul %6, %7, %cst_9 {dimension_numbers = #tpu.dot_dimension_numbers<[1], [0], [0], [1], [0, 0, 1, 1], [], []>} : vector<2x32xf32>, vector<32x96xf32>, vector<2x96xf32> -> vector<2x96xf32>
    %c0_10 = arith.constant 0 : index
    %c0_11 = arith.constant 0 : index
    %9 = vector.load %arg6[%c0_10, %c0_11] : memref<1x96xf32, #tpu.memory_space<vmem>>, vector<1x96xf32>
    %10 = vector.broadcast %9 : vector<1x96xf32> to vector<2x96xf32>
    %11 = arith.addf %8, %10 : vector<2x96xf32>
    %12 = vector.extract_strided_slice %5 {offsets = [0, 0], sizes = [2, 32], strides = [1, 1]} : vector<2x96xf32> to vector<2x32xf32>
    %13 = vector.extract_strided_slice %5 {offsets = [0, 32], sizes = [2, 32], strides = [1, 1]} : vector<2x96xf32> to vector<2x32xf32>
    %14 = vector.extract_strided_slice %5 {offsets = [0, 64], sizes = [2, 32], strides = [1, 1]} : vector<2x96xf32> to vector<2x32xf32>
    %15 = vector.extract_strided_slice %11 {offsets = [0, 0], sizes = [2, 32], strides = [1, 1]} : vector<2x96xf32> to vector<2x32xf32>
    %16 = vector.extract_strided_slice %11 {offsets = [0, 32], sizes = [2, 32], strides = [1, 1]} : vector<2x96xf32> to vector<2x32xf32>
    %17 = vector.extract_strided_slice %11 {offsets = [0, 64], sizes = [2, 32], strides = [1, 1]} : vector<2x96xf32> to vector<2x32xf32>
    %18 = vector.extract_strided_slice %12 {offsets = [0, 0], sizes = [2, 16], strides = [1, 1]} : vector<2x32xf32> to vector<2x16xf32>
    %19 = vector.extract_strided_slice %16 {offsets = [0, 0], sizes = [2, 16], strides = [1, 1]} : vector<2x32xf32> to vector<2x16xf32>
    %20 = arith.mulf %18, %19 : vector<2x16xf32>
    %cst_12 = arith.constant dense<0.000000e+00> : vector<2xf32>
    %21 = vector.multi_reduction <add>, %20, %cst_12 [1] : vector<2x16xf32> to vector<2xf32>
    %22 = vector.shape_cast %21 : vector<2xf32> to vector<2x1xf32>
    %23 = vector.extract_strided_slice %16 {offsets = [0, 16], sizes = [2, 16], strides = [1, 1]} : vector<2x32xf32> to vector<2x16xf32>
    %24 = arith.mulf %18, %23 : vector<2x16xf32>
    %cst_13 = arith.constant dense<0.000000e+00> : vector<2xf32>
    %25 = vector.multi_reduction <add>, %24, %cst_13 [1] : vector<2x16xf32> to vector<2xf32>
    %26 = vector.shape_cast %25 : vector<2xf32> to vector<2x1xf32>
    %27 = arith.maximumf %22, %26 : vector<2x1xf32>
    %28 = arith.subf %22, %27 : vector<2x1xf32>
    %29 = math.exp %28 : vector<2x1xf32>
    %30 = arith.subf %26, %27 : vector<2x1xf32>
    %31 = math.exp %30 : vector<2x1xf32>
    %32 = arith.addf %29, %31 : vector<2x1xf32>
    %33 = tpu.reciprocal %32 : vector<2x1xf32> -> vector<2x1xf32>
    %34 = arith.mulf %29, %33 : vector<2x1xf32>
    %35 = vector.extract_strided_slice %17 {offsets = [0, 0], sizes = [2, 16], strides = [1, 1]} : vector<2x32xf32> to vector<2x16xf32>
    %36 = vector.broadcast %34 : vector<2x1xf32> to vector<2x16xf32>
    %37 = arith.mulf %36, %35 : vector<2x16xf32>
    %38 = arith.mulf %31, %33 : vector<2x1xf32>
    %39 = vector.extract_strided_slice %17 {offsets = [0, 16], sizes = [2, 16], strides = [1, 1]} : vector<2x32xf32> to vector<2x16xf32>
    %40 = vector.broadcast %38 : vector<2x1xf32> to vector<2x16xf32>
    %41 = arith.mulf %40, %39 : vector<2x16xf32>
    %42 = arith.addf %37, %41 : vector<2x16xf32>
    %43 = vector.extract_strided_slice %12 {offsets = [0, 16], sizes = [2, 16], strides = [1, 1]} : vector<2x32xf32> to vector<2x16xf32>
    %44 = vector.extract_strided_slice %16 {offsets = [0, 0], sizes = [2, 16], strides = [1, 1]} : vector<2x32xf32> to vector<2x16xf32>
    %45 = arith.mulf %43, %44 : vector<2x16xf32>
    %cst_14 = arith.constant dense<0.000000e+00> : vector<2xf32>
    %46 = vector.multi_reduction <add>, %45, %cst_14 [1] : vector<2x16xf32> to vector<2xf32>
    %47 = vector.shape_cast %46 : vector<2xf32> to vector<2x1xf32>
    %48 = vector.extract_strided_slice %16 {offsets = [0, 16], sizes = [2, 16], strides = [1, 1]} : vector<2x32xf32> to vector<2x16xf32>
    %49 = arith.mulf %43, %48 : vector<2x16xf32>
    %cst_15 = arith.constant dense<0.000000e+00> : vector<2xf32>
    %50 = vector.multi_reduction <add>, %49, %cst_15 [1] : vector<2x16xf32> to vector<2xf32>
    %51 = vector.shape_cast %50 : vector<2xf32> to vector<2x1xf32>
    %52 = arith.maximumf %47, %51 : vector<2x1xf32>
    %53 = arith.subf %47, %52 : vector<2x1xf32>
    %54 = math.exp %53 : vector<2x1xf32>
    %55 = arith.subf %51, %52 : vector<2x1xf32>
    %56 = math.exp %55 : vector<2x1xf32>
    %57 = arith.addf %54, %56 : vector<2x1xf32>
    %58 = tpu.reciprocal %57 : vector<2x1xf32> -> vector<2x1xf32>
    %59 = arith.mulf %54, %58 : vector<2x1xf32>
    %60 = vector.extract_strided_slice %17 {offsets = [0, 0], sizes = [2, 16], strides = [1, 1]} : vector<2x32xf32> to vector<2x16xf32>
    %61 = vector.broadcast %59 : vector<2x1xf32> to vector<2x16xf32>
    %62 = arith.mulf %61, %60 : vector<2x16xf32>
    %63 = arith.mulf %56, %58 : vector<2x1xf32>
    %64 = vector.extract_strided_slice %17 {offsets = [0, 16], sizes = [2, 16], strides = [1, 1]} : vector<2x32xf32> to vector<2x16xf32>
    %65 = vector.broadcast %63 : vector<2x1xf32> to vector<2x16xf32>
    %66 = arith.mulf %65, %64 : vector<2x16xf32>
    %67 = arith.addf %62, %66 : vector<2x16xf32>
    %68 = vector.extract_strided_slice %15 {offsets = [0, 0], sizes = [2, 16], strides = [1, 1]} : vector<2x32xf32> to vector<2x16xf32>
    %69 = vector.extract_strided_slice %13 {offsets = [0, 0], sizes = [2, 16], strides = [1, 1]} : vector<2x32xf32> to vector<2x16xf32>
    %70 = arith.mulf %68, %69 : vector<2x16xf32>
    %cst_16 = arith.constant dense<0.000000e+00> : vector<2xf32>
    %71 = vector.multi_reduction <add>, %70, %cst_16 [1] : vector<2x16xf32> to vector<2xf32>
    %72 = vector.shape_cast %71 : vector<2xf32> to vector<2x1xf32>
    %73 = vector.extract_strided_slice %13 {offsets = [0, 16], sizes = [2, 16], strides = [1, 1]} : vector<2x32xf32> to vector<2x16xf32>
    %74 = arith.mulf %68, %73 : vector<2x16xf32>
    %cst_17 = arith.constant dense<0.000000e+00> : vector<2xf32>
    %75 = vector.multi_reduction <add>, %74, %cst_17 [1] : vector<2x16xf32> to vector<2xf32>
    %76 = vector.shape_cast %75 : vector<2xf32> to vector<2x1xf32>
    %77 = arith.maximumf %72, %76 : vector<2x1xf32>
    %78 = arith.subf %72, %77 : vector<2x1xf32>
    %79 = math.exp %78 : vector<2x1xf32>
    %80 = arith.subf %76, %77 : vector<2x1xf32>
    %81 = math.exp %80 : vector<2x1xf32>
    %82 = arith.addf %79, %81 : vector<2x1xf32>
    %83 = tpu.reciprocal %82 : vector<2x1xf32> -> vector<2x1xf32>
    %84 = arith.mulf %79, %83 : vector<2x1xf32>
    %85 = vector.extract_strided_slice %14 {offsets = [0, 0], sizes = [2, 16], strides = [1, 1]} : vector<2x32xf32> to vector<2x16xf32>
    %86 = vector.broadcast %84 : vector<2x1xf32> to vector<2x16xf32>
    %87 = arith.mulf %86, %85 : vector<2x16xf32>
    %88 = arith.mulf %81, %83 : vector<2x1xf32>
    %89 = vector.extract_strided_slice %14 {offsets = [0, 16], sizes = [2, 16], strides = [1, 1]} : vector<2x32xf32> to vector<2x16xf32>
    %90 = vector.broadcast %88 : vector<2x1xf32> to vector<2x16xf32>
    %91 = arith.mulf %90, %89 : vector<2x16xf32>
    %92 = arith.addf %87, %91 : vector<2x16xf32>
    %93 = vector.extract_strided_slice %15 {offsets = [0, 16], sizes = [2, 16], strides = [1, 1]} : vector<2x32xf32> to vector<2x16xf32>
    %94 = vector.extract_strided_slice %13 {offsets = [0, 0], sizes = [2, 16], strides = [1, 1]} : vector<2x32xf32> to vector<2x16xf32>
    %95 = arith.mulf %93, %94 : vector<2x16xf32>
    %cst_18 = arith.constant dense<0.000000e+00> : vector<2xf32>
    %96 = vector.multi_reduction <add>, %95, %cst_18 [1] : vector<2x16xf32> to vector<2xf32>
    %97 = vector.shape_cast %96 : vector<2xf32> to vector<2x1xf32>
    %98 = vector.extract_strided_slice %13 {offsets = [0, 16], sizes = [2, 16], strides = [1, 1]} : vector<2x32xf32> to vector<2x16xf32>
    %99 = arith.mulf %93, %98 : vector<2x16xf32>
    %cst_19 = arith.constant dense<0.000000e+00> : vector<2xf32>
    %100 = vector.multi_reduction <add>, %99, %cst_19 [1] : vector<2x16xf32> to vector<2xf32>
    %101 = vector.shape_cast %100 : vector<2xf32> to vector<2x1xf32>
    %102 = arith.maximumf %97, %101 : vector<2x1xf32>
    %103 = arith.subf %97, %102 : vector<2x1xf32>
    %104 = math.exp %103 : vector<2x1xf32>
    %105 = arith.subf %101, %102 : vector<2x1xf32>
    %106 = math.exp %105 : vector<2x1xf32>
    %107 = arith.addf %104, %106 : vector<2x1xf32>
    %108 = tpu.reciprocal %107 : vector<2x1xf32> -> vector<2x1xf32>
    %109 = arith.mulf %104, %108 : vector<2x1xf32>
    %110 = vector.extract_strided_slice %14 {offsets = [0, 0], sizes = [2, 16], strides = [1, 1]} : vector<2x32xf32> to vector<2x16xf32>
    %111 = vector.broadcast %109 : vector<2x1xf32> to vector<2x16xf32>
    %112 = arith.mulf %111, %110 : vector<2x16xf32>
    %113 = arith.mulf %106, %108 : vector<2x1xf32>
    %114 = vector.extract_strided_slice %14 {offsets = [0, 16], sizes = [2, 16], strides = [1, 1]} : vector<2x32xf32> to vector<2x16xf32>
    %115 = vector.broadcast %113 : vector<2x1xf32> to vector<2x16xf32>
    %116 = arith.mulf %115, %114 : vector<2x16xf32>
    %117 = arith.addf %112, %116 : vector<2x16xf32>
    %c0_20 = arith.constant 0 : index
    %c0_21 = arith.constant 0 : index
    %118 = vector.load %arg10[%c0_20, %c0_21] : memref<2x64xf32, #tpu.memory_space<vmem>>, vector<2x16xf32>
    tpu.vector_store %arg10[%c0_20, %c0_21], %42 {strides = array<i32>} : memref<2x64xf32, #tpu.memory_space<vmem>>, vector<2x16xf32>,
    %c0_22 = arith.constant 0 : index
    %c16 = arith.constant 16 : index
    %119 = vector.load %arg10[%c0_22, %c16] : memref<2x64xf32, #tpu.memory_space<vmem>>, vector<2x16xf32>
    tpu.vector_store %arg10[%c0_22, %c16], %67 {strides = array<i32>} : memref<2x64xf32, #tpu.memory_space<vmem>>, vector<2x16xf32>,
    %c0_23 = arith.constant 0 : index
    %c32 = arith.constant 32 : index
    %120 = vector.load %arg10[%c0_23, %c32] : memref<2x64xf32, #tpu.memory_space<vmem>>, vector<2x16xf32>
    tpu.vector_store %arg10[%c0_23, %c32], %92 {strides = array<i32>} : memref<2x64xf32, #tpu.memory_space<vmem>>, vector<2x16xf32>,
    %c0_24 = arith.constant 0 : index
    %c48 = arith.constant 48 : index
    %121 = vector.load %arg10[%c0_24, %c48] : memref<2x64xf32, #tpu.memory_space<vmem>>, vector<2x16xf32>
    tpu.vector_store %arg10[%c0_24, %c48], %117 {strides = array<i32>} : memref<2x64xf32, #tpu.memory_space<vmem>>, vector<2x16xf32>,
    %c0_25 = arith.constant 0 : index
    %c0_26 = arith.constant 0 : index
    %122 = vector.load %arg10[%c0_25, %c0_26] : memref<2x64xf32, #tpu.memory_space<vmem>>, vector<2x64xf32>
    %c0_27 = arith.constant 0 : index
    %c0_28 = arith.constant 0 : index
    %123 = vector.load %arg7[%c0_27, %c0_28] : memref<64x128xf32, #tpu.memory_space<vmem>>, vector<64x128xf32>
    %cst_29 = arith.constant dense<0.000000e+00> : vector<2x128xf32>
    %124 = tpu.matmul %122, %123, %cst_29 {dimension_numbers = #tpu.dot_dimension_numbers<[1], [0], [0], [1], [0, 0, 1, 1], [], []>} : vector<2x64xf32>, vector<64x128xf32>, vector<2x128xf32> -> vector<2x128xf32>
    %c0_30 = arith.constant 0 : index
    %c0_31 = arith.constant 0 : index
    %125 = vector.load %arg8[%c0_30, %c0_31] : memref<1x128xf32, #tpu.memory_space<vmem>>, vector<1x128xf32>
    %126 = vector.broadcast %125 : vector<1x128xf32> to vector<2x128xf32>
    %127 = arith.addf %124, %126 : vector<2x128xf32>
    %c0_32 = arith.constant 0 : index
    %c0_33 = arith.constant 0 : index
    %128 = vector.load %arg9[%c0_32, %c0_33] : memref<2x128xf32, #tpu.memory_space<vmem>>, vector<2x128xf32>
    tpu.vector_store %arg9[%c0_32, %c0_33], %127 {strides = array<i32>} : memref<2x128xf32, #tpu.memory_space<vmem>>, vector<2x128xf32>,
    return
  }
  func.func @transform_0(%arg0: i32) -> (i32, i32) {
    %c0_i32 = arith.constant 0 : i32
    %c0_i32_0 = arith.constant 0 : i32
    return %arg0, %c0_i32 : i32, i32
  }
  func.func @transform_1(%arg0: i32) -> (i32, i32) {
    %c0_i32 = arith.constant 0 : i32
    %c0_i32_0 = arith.constant 0 : i32
    return %arg0, %c0_i32 : i32, i32
  }
  func.func @transform_2(%arg0: i32) -> (i32, i32) {
    %c0_i32 = arith.constant 0 : i32
    %c0_i32_0 = arith.constant 0 : i32
    %c0_i32_1 = arith.constant 0 : i32
    return %c0_i32, %c0_i32_0 : i32, i32
  }
  func.func @transform_3(%arg0: i32) -> (i32, i32) {
    %c0_i32 = arith.constant 0 : i32
    %c0_i32_0 = arith.constant 0 : i32
    %c0_i32_1 = arith.constant 0 : i32
    return %c0_i32, %c0_i32_0 : i32, i32
  }
  func.func @transform_4(%arg0: i32) -> (i32, i32) {
    %c0_i32 = arith.constant 0 : i32
    %c0_i32_0 = arith.constant 0 : i32
    %c0_i32_1 = arith.constant 0 : i32
    return %c0_i32, %c0_i32_0 : i32, i32
  }
  func.func @transform_5(%arg0: i32) -> (i32, i32) {
    %c0_i32 = arith.constant 0 : i32
    %c0_i32_0 = arith.constant 0 : i32
    %c0_i32_1 = arith.constant 0 : i32
    return %c0_i32, %c0_i32_0 : i32, i32
  }
  func.func @transform_6(%arg0: i32) -> (i32, i32) {
    %c0_i32 = arith.constant 0 : i32
    %c0_i32_0 = arith.constant 0 : i32
    %c0_i32_1 = arith.constant 0 : i32
    return %c0_i32, %c0_i32_0 : i32, i32
  }
  func.func @transform_7(%arg0: i32) -> (i32, i32) {
    %c0_i32 = arith.constant 0 : i32
    %c0_i32_0 = arith.constant 0 : i32
    %c0_i32_1 = arith.constant 0 : i32
    return %c0_i32, %c0_i32_0 : i32, i32
  }
  func.func @transform_8(%arg0: i32) -> (i32, i32) {
    %c0_i32 = arith.constant 0 : i32
    %c0_i32_0 = arith.constant 0 : i32
    return %arg0, %c0_i32 : i32, i32
  }
}

</mosaic_0001>

<llo_original>
// kernel: tpu_custom_call.1
$region0: #{tpu_custom_call.1}
  #allocation0 [shape = 'u32[]', space=smem, size = 0x4, offset = 0x4, fixed_abs, tag = 'smem constant byte address 0x4 - core index']
  #allocation1 [shape = 'u32[144,128]{1,0:T(1,128)}', space=vmem, size = 0x12000, scoped, tag = 'internal scratch']
  #allocation2 [shape = 'f32[2,64]{1,0:T(2,128)}', space=vmem, size = 0x400, scoped, tag = 'scratch operand']
  %s0 = inlined_call_operand.hbm [shape: f32[2,32], index: 0, kind: input, shape index: {}]
  %s1 = inlined_call_operand.hbm [shape: f32[2,32], index: 1, kind: input, shape index: {}]
  %s2 = inlined_call_operand.hbm [shape: f32[32,96], index: 2, kind: input, shape index: {}]
  %s3 = inlined_call_operand.vmem [shape: f32[1,96], index: 3, kind: input, shape index: {}]
  %s4 = inlined_call_operand.hbm [shape: f32[32,96], index: 4, kind: input, shape index: {}]
  %s5 = inlined_call_operand.vmem [shape: f32[1,96], index: 5, kind: input, shape index: {}]
  %s6 = inlined_call_operand.hbm [shape: f32[64,128], index: 6, kind: input, shape index: {}]
  %s7 = inlined_call_operand.vmem [shape: f32[1,128], index: 7, kind: input, shape index: {}]
  %s8 = inlined_call_operand.hbm [shape: f32[2,128], index: 8, kind: output, shape index: {}]
  %s9 = sld [smem:[#allocation0]]
  $region62: #{tpu_custom_call.1} parent=0
    _
  %s11 = ssub.s32 1, %s9
  %s12 = scalar_select 0, %s11, %s9
  $region1: #{tpu_custom_call.1} parent=0
    #allocation3 [shape = 'u8[1024]{0}', space=vmem, size = 0x400, scoped, tag = 'input window, operand 0, single buffered']
    #allocation4 [shape = 's32[1]{0}', space=sflag, size = 0x4, scoped, tag = 'scoped memory for tpu_custom_call.1']
    #allocation5 [shape = 's32[1]{0}', space=sflag, size = 0x4, scoped, tag = 'scoped memory for tpu_custom_call.1']
    #allocation6 [shape = 'u8[1024]{0}', space=vmem, size = 0x400, scoped, tag = 'input window, operand 1, single buffered']
    #allocation7 [shape = 's32[1]{0}', space=sflag, size = 0x4, scoped, tag = 'scoped memory for tpu_custom_call.1']
    #allocation8 [shape = 'u8[16384]{0}', space=vmem, size = 0x4000, scoped, tag = 'input window, operand 2, single buffered']
    #allocation9 [shape = 'u8[16384]{0}', space=vmem, size = 0x4000, scoped, tag = 'input window, operand 4, single buffered']
    #allocation10 [shape = 's32[1]{0}', space=sflag, size = 0x4, scoped, tag = 'scoped memory for tpu_custom_call.1']
    #allocation11 [shape = 'u8[32768]{0}', space=vmem, size = 0x8000, scoped, tag = 'input window, operand 6, single buffered']
    #allocation12 [shape = 'u8[1024]{0}', space=vmem, size = 0x400, scoped, tag = 'output window, operand 0, single buffered']
    %13 = vsyncpa [#allocation4], 0
    %14 = vsyncpa [#allocation7], 0
    %15 = vsyncpa [#allocation10], 0
    %16 = vsyncpa [#allocation5], 0
    // Predicated region
    $region2: #{tpu_custom_call.1} parent=1 // pred_check
      _
    $region3: #{tpu_custom_call.1} parent=1 // pred_check_branch
      %18 = sbr.rel (0) target = $region5
    $region4: #{tpu_custom_call.1} parent=1 // pred_region
      %s20 = ssub.s32 32, 32
      %21 = vsyncadd [#allocation4], %s20
      %s23 = sshll.u32 [#allocation3], 4
      %s24 = int_to_ptr.vmem [resolvable:$true] %s23
      %26 = dma.hbm_to_vmem [thread:$0]  %s0, 32, %s24, [#allocation4]
    $region5: #{tpu_custom_call.1} parent=1 // pred_fallthru
      _
    // Predicated region
    $region6: #{tpu_custom_call.1} parent=1 // pred_check
      _
    $region7: #{tpu_custom_call.1} parent=1 // pred_check_branch
      %28 = sbr.rel (0) target = $region9
    $region8: #{tpu_custom_call.1} parent=1 // pred_region
      %s30 = ssub.s32 32, 32
      %31 = vsyncadd [#allocation7], %s30
      %s33 = sshll.u32 [#allocation6], 4
      %s34 = int_to_ptr.vmem [resolvable:$true] %s33
      %36 = dma.hbm_to_vmem [thread:$0]  %s1, 32, %s34, [#allocation7]
    $region9: #{tpu_custom_call.1} parent=1 // pred_fallthru
      _
    // Predicated region
    $region10: #{tpu_custom_call.1} parent=1 // pred_check
      _
    $region11: #{tpu_custom_call.1} parent=1 // pred_check_branch
      %38 = sbr.rel (0) target = $region13
    $region12: #{tpu_custom_call.1} parent=1 // pred_region
      %s40 = ssub.s32 512, 512
      %41 = vsyncadd [#allocation7], %s40
      %s42 = sshll.u32 [#allocation8], 4
      %s43 = int_to_ptr.vmem [resolvable:$true] %s42
      %48 = dma.hbm_to_vmem [thread:$0]  %s2, 512, %s43, [#allocation7], 128, 128, 8
    $region13: #{tpu_custom_call.1} parent=1 // pred_fallthru
      _
    // Predicated region
    $region14: #{tpu_custom_call.1} parent=1 // pred_check
      _
    $region15: #{tpu_custom_call.1} parent=1 // pred_check_branch
      %50 = sbr.rel (0) target = $region17
    $region16: #{tpu_custom_call.1} parent=1 // pred_region
      _
    $region17: #{tpu_custom_call.1} parent=1 // pred_fallthru
      _
    // Predicated region
    $region18: #{tpu_custom_call.1} parent=1 // pred_check
      _
    $region19: #{tpu_custom_call.1} parent=1 // pred_check_branch
      %52 = sbr.rel (0) target = $region21
    $region20: #{tpu_custom_call.1} parent=1 // pred_region
      %s54 = ssub.s32 512, 512
      %55 = vsyncadd [#allocation10], %s54
      %s56 = sshll.u32 [#allocation9], 4
      %s57 = int_to_ptr.vmem [resolvable:$true] %s56
      %62 = dma.hbm_to_vmem [thread:$0]  %s4, 512, %s57, [#allocation10], 128, 128, 8
    $region21: #{tpu_custom_call.1} parent=1 // pred_fallthru
      _
    // Predicated region
    $region22: #{tpu_custom_call.1} parent=1 // pred_check
      _
    $region23: #{tpu_custom_call.1} parent=1 // pred_check_branch
      %64 = sbr.rel (0) target = $region25
    $region24: #{tpu_custom_call.1} parent=1 // pred_region
      _
    $region25: #{tpu_custom_call.1} parent=1 // pred_fallthru
      _
    // Predicated region
    $region26: #{tpu_custom_call.1} parent=1 // pred_check
      _
    $region27: #{tpu_custom_call.1} parent=1 // pred_check_branch
      %66 = sbr.rel (0) target = $region29
    $region28: #{tpu_custom_call.1} parent=1 // pred_region
      %s68 = ssub.s32 1024, 1024
      %69 = vsyncadd [#allocation10], %s68
      %s70 = sshll.u32 [#allocation11], 4
      %s71 = int_to_ptr.vmem [resolvable:$true] %s70
      %76 = dma.hbm_to_vmem [thread:$0]  %s6, 1024, %s71, [#allocation10], 128, 128, 8
    $region29: #{tpu_custom_call.1} parent=1 // pred_fallthru
      _
    // Predicated region
    $region30: #{tpu_custom_call.1} parent=1 // pred_check
      _
    $region31: #{tpu_custom_call.1} parent=1 // pred_check_branch
      %78 = sbr.rel (0) target = $region33
    $region32: #{tpu_custom_call.1} parent=1 // pred_region
      _
    $region33: #{tpu_custom_call.1} parent=1 // pred_fallthru
      _
    // Predicated region
    $region34: #{tpu_custom_call.1} parent=1 // pred_check
      _
    $region35: #{tpu_custom_call.1} parent=1 // pred_check_branch
      %80 = sbr.rel (0) target = $region37
    $region36: #{tpu_custom_call.1} parent=1 // pred_region
      %81 = dma.done [#allocation4], 32
    $region37: #{tpu_custom_call.1} parent=1 // pred_fallthru
      _
    // Predicated region
    $region38: #{tpu_custom_call.1} parent=1 // pred_check
      _
    $region39: #{tpu_custom_call.1} parent=1 // pred_check_branch
      %83 = sbr.rel (0) target = $region41
    $region40: #{tpu_custom_call.1} parent=1 // pred_region
      %84 = dma.done [#allocation7], 32
    $region41: #{tpu_custom_call.1} parent=1 // pred_fallthru
      _
    // Predicated region
    $region42: #{tpu_custom_call.1} parent=1 // pred_check
      _
    $region43: #{tpu_custom_call.1} parent=1 // pred_check_branch
      %86 = sbr.rel (0) target = $region45
    $region44: #{tpu_custom_call.1} parent=1 // pred_region
      %87 = dma.done [#allocation7], 512
    $region45: #{tpu_custom_call.1} parent=1 // pred_fallthru
      _
    // Predicated region
    $region46: #{tpu_custom_call.1} parent=1 // pred_check
      _
    $region47: #{tpu_custom_call.1} parent=1 // pred_check_branch
      %89 = sbr.rel (0) target = $region49
    $region48: #{tpu_custom_call.1} parent=1 // pred_region
      %90 = dma.done [#allocation10], 512
    $region49: #{tpu_custom_call.1} parent=1 // pred_fallthru
      _
    // Predicated region
    $region50: #{tpu_custom_call.1} parent=1 // pred_check
      _
    $region51: #{tpu_custom_call.1} parent=1 // pred_check_branch
      %92 = sbr.rel (0) target = $region53
    $region52: #{tpu_custom_call.1} parent=1 // pred_region
      %93 = dma.done [#allocation10], 1024
    $region53: #{tpu_custom_call.1} parent=1 // pred_fallthru
      _
    %v94 = vld [vmem:[#allocation3] sm:$0x3]
    %v95 = vld [vmem:[#allocation8] sm:$0xff]
    %v96 = vld [vmem:[#allocation8 + $0x8] sm:$0xff]
    %v97 = vld [vmem:[#allocation8 + $0x10] sm:$0xff]
    %v98 = vld [vmem:[#allocation8 + $0x18] sm:$0xff]
    %v99 = vld [vmem:[%s3] sm:$0x1]
    %v101 = vlaneseq
    %v102 = vshrl.u32 %v101, 7
    %v103 = vsub.s32 0, %v102
    %v104 = vrot.slane %v99, %v103
    %vm106 = vcmask 261120
    %v108 = vsel %vm106, %v94, 0
    %110 = vmatprep.subr.mxu0 0.0
    %111 = vmatpush1.msra.mxu0 0.0
    %112 = vmatprep.subr.mxu0 0.0
    %113 = vmatpush1.msra.mxu0 0.0
    %114 = vmatprep.subr.mxu0 0.0
    %115 = vmatpush1.msra.mxu0 0.0
    %116 = vmatprep.subr.mxu0 0.0
    %117 = vmatpush1.msra.mxu0 0.0
    %118 = vmatprep.subr.mxu0 0.0
    %119 = vmatpush1.msra.mxu0 0.0
    %120 = vmatprep.subr.mxu0 0.0
    %121 = vmatpush1.msra.mxu0 0.0
    %122 = vmatprep.subr.mxu0 0.0
    %123 = vmatpush1.msra.mxu0 0.0
    %124 = vmatprep.subr.mxu0 0.0
    %125 = vmatpush1.msra.mxu0 0.0
    %126 = vmatprep.subr.mxu0 0.0
    %127 = vmatpush1.msra.mxu0 0.0
    %128 = vmatprep.subr.mxu0 0.0
    %129 = vmatpush1.msra.mxu0 0.0
    %130 = vmatprep.subr.mxu0 0.0
    %131 = vmatpush1.msra.mxu0 0.0
    %132 = vmatprep.subr.mxu0 0.0
    %133 = vmatpush1.msra.mxu0 0.0
    %134 = vmatprep.subr.mxu0 0.0
    %135 = vmatpush1.msra.mxu0 %v98
    %136 = vmatprep.subr.mxu0 0.0
    %137 = vmatpush1.msra.mxu0 %v97
    %138 = vmatprep.subr.mxu0 0.0
    %139 = vmatpush1.msra.mxu0 %v96
    %140 = vmatprep.subr.mxu0 0.0
    %141 = vmatpush1.msra.mxu0 %v95
    %142 = vmatprep.subr.mxu0 0.0
    %143 = vmatpush2.msra.mxu0 0.0
    %144 = vmatprep.subr.mxu0 0.0
    %145 = vmatpush2.msra.mxu0 0.0
    %146 = vmatprep.subr.mxu0 0.0
    %147 = vmatpush2.msra.mxu0 0.0
    %148 = vmatprep.subr.mxu0 0.0
    %149 = vmatpush2.msra.mxu0 0.0
    %150 = vmatprep.subr.mxu0 0.0
    %151 = vmatpush2.msra.mxu0 0.0
    %152 = vmatprep.subr.mxu0 0.0
    %153 = vmatpush2.msra.mxu0 0.0
    %154 = vmatprep.subr.mxu0 0.0
    %155 = vmatpush2.msra.mxu0 0.0
    %156 = vmatprep.subr.mxu0 0.0
    %157 = vmatpush2.msra.mxu0 0.0
    %158 = vmatprep.subr.mxu0 0.0
    %159 = vmatpush2.msra.mxu0 0.0
    %160 = vmatprep.subr.mxu0 0.0
    %161 = vmatpush2.msra.mxu0 0.0
    %162 = vmatprep.subr.mxu0 0.0
    %163 = vmatpush2.msra.mxu0 0.0
    %164 = vmatprep.subr.mxu0 0.0
    %165 = vmatpush2.msra.mxu0 0.0
    %166 = vmatprep.subr.mxu0 0.0
    %167 = vmatpush2.msra.mxu0 0.0
    %168 = vmatprep.subr.mxu0 0.0
    %169 = vmatpush2.msra.mxu0 0.0
    %170 = vmatprep.subr.mxu0 0.0
    %171 = vmatpush2.msra.mxu0 0.0
    %172 = vmatprep.subr.mxu0 0.0
    %173 = vmatpush2.msra.mxu0 0.0
    %174 = vmatprep.mubr.f32.mxu0 0.0
    %175 = vmatmul.mubr.f32.gmra.mxu0 %v108
    %v176 = vpop.f32.mrf.mxu0
    %v177 = vadd.f32 %v104, %v176
    %v178 = vpop.f32.mrf.mxu0
    %179 = vdwg.mxu0
    %v180 = vld [vmem:[#allocation6] sm:$0x3]
    %v181 = vld [vmem:[#allocation9] sm:$0xff]
    %v182 = vld [vmem:[#allocation9 + $0x8] sm:$0xff]
    %v183 = vld [vmem:[#allocation9 + $0x10] sm:$0xff]
    %v184 = vld [vmem:[#allocation9 + $0x18] sm:$0xff]
    %v185 = vld [vmem:[%s5] sm:$0x1]
    %v187 = vlaneseq
    %v188 = vshrl.u32 %v187, 7
    %v189 = vsub.s32 0, %v188
    %v190 = vrot.slane %v185, %v189
    %v193 = vsel %vm106, %v180, 0
    %195 = vmatprep.subr.mxu0 0.0
    %196 = vmatpush1.msra.mxu0 0.0
    %197 = vmatprep.subr.mxu0 0.0
    %198 = vmatpush1.msra.mxu0 0.0
    %199 = vmatprep.subr.mxu0 0.0
    %200 = vmatpush1.msra.mxu0 0.0
    %201 = vmatprep.subr.mxu0 0.0
    %202 = vmatpush1.msra.mxu0 0.0
    %203 = vmatprep.subr.mxu0 0.0
    %204 = vmatpush1.msra.mxu0 0.0
    %205 = vmatprep.subr.mxu0 0.0
    %206 = vmatpush1.msra.mxu0 0.0
    %207 = vmatprep.subr.mxu0 0.0
    %208 = vmatpush1.msra.mxu0 0.0
    %209 = vmatprep.subr.mxu0 0.0
    %210 = vmatpush1.msra.mxu0 0.0
    %211 = vmatprep.subr.mxu0 0.0
    %212 = vmatpush1.msra.mxu0 0.0
    %213 = vmatprep.subr.mxu0 0.0
    %214 = vmatpush1.msra.mxu0 0.0
    %215 = vmatprep.subr.mxu0 0.0
    %216 = vmatpush1.msra.mxu0 0.0
    %217 = vmatprep.subr.mxu0 0.0
    %218 = vmatpush1.msra.mxu0 0.0
    %219 = vmatprep.subr.mxu0 0.0
    %220 = vmatpush1.msra.mxu0 %v184
    %221 = vmatprep.subr.mxu0 0.0
    %222 = vmatpush1.msra.mxu0 %v183
    %223 = vmatprep.subr.mxu0 0.0
    %224 = vmatpush1.msra.mxu0 %v182
    %225 = vmatprep.subr.mxu0 0.0
    %226 = vmatpush1.msra.mxu0 %v181
    %227 = vmatprep.subr.mxu0 0.0
    %228 = vmatpush2.msra.mxu0 0.0
    %229 = vmatprep.subr.mxu0 0.0
    %230 = vmatpush2.msra.mxu0 0.0
    %231 = vmatprep.subr.mxu0 0.0
    %232 = vmatpush2.msra.mxu0 0.0
    %233 = vmatprep.subr.mxu0 0.0
    %234 = vmatpush2.msra.mxu0 0.0
    %235 = vmatprep.subr.mxu0 0.0
    %236 = vmatpush2.msra.mxu0 0.0
    %237 = vmatprep.subr.mxu0 0.0
    %238 = vmatpush2.msra.mxu0 0.0
    %239 = vmatprep.subr.mxu0 0.0
    %240 = vmatpush2.msra.mxu0 0.0
    %241 = vmatprep.subr.mxu0 0.0
    %242 = vmatpush2.msra.mxu0 0.0
    %243 = vmatprep.subr.mxu0 0.0
    %244 = vmatpush2.msra.mxu0 0.0
    %245 = vmatprep.subr.mxu0 0.0
    %246 = vmatpush2.msra.mxu0 0.0
    %247 = vmatprep.subr.mxu0 0.0
    %248 = vmatpush2.msra.mxu0 0.0
    %249 = vmatprep.subr.mxu0 0.0
    %250 = vmatpush2.msra.mxu0 0.0
    %251 = vmatprep.subr.mxu0 0.0
    %252 = vmatpush2.msra.mxu0 0.0
    %253 = vmatprep.subr.mxu0 0.0
    %254 = vmatpush2.msra.mxu0 0.0
    %255 = vmatprep.subr.mxu0 0.0
    %256 = vmatpush2.msra.mxu0 0.0
    %257 = vmatprep.subr.mxu0 0.0
    %258 = vmatpush2.msra.mxu0 0.0
    %259 = vmatprep.mubr.f32.mxu0 0.0
    %260 = vmatmul.mubr.f32.gmra.mxu0 %v193
    %v261 = vpop.f32.mrf.mxu0
    %v262 = vadd.f32 %v190, %v261
    %v263 = vpop.f32.mrf.mxu0
    %264 = vdwg.mxu0
    %266 = vrot.lane.b32.xlu0 %v262, 96
    %v267 = vpop.permute.xlu0 %266
    %v269 = vmul.f32 %v177, %v267
    %vm270 = vcmask 123904
    %v271 = vsel %vm270, %v269, 0.0
    %272 = vadd.xlane.f32.xlu0 %v271
    %v273 = vpop.xlane.xlu0 %272
    %274 = vrot.lane.b32.xlu0 %v262, 80
    %v275 = vpop.permute.xlu0 %274
    %v277 = vmul.f32 %v177, %v275
    %v278 = vsel %vm270, %v277, 0.0
    %279 = vadd.xlane.f32.xlu0 %v278
    %v280 = vpop.xlane.xlu0 %279
    %v281 = vmax.f32 %v273, %v280
    %v282 = vsub.f32 %v273, %v281
    %v283 = vmul.f32 %v282, 1.442695
    %v284 = vpow.pop %v283
    %v285 = vsub.f32 %v280, %v281
    %v286 = vmul.f32 %v285, 1.442695
    %v287 = vpow.pop %v286
    %v288 = vadd.f32 %v284, %v287
    %v289 = vrcp.pop %v288
    %v290 = vmul.f32 %v284, %v289
    %v291 = vmul.f32 %v290, %v262
    %v292 = vmul.f32 %v287, %v289
    %v293 = vmul.f32 %v292, %v262
    %295 = vrot.lane.b32.xlu0 %v293, 112
    %v296 = vpop.permute.xlu0 %295
    %v298 = vadd.f32 %v291, %v296
    %299 = vrot.lane.b32.xlu0 %v262, 112
    %v300 = vpop.permute.xlu0 %299
    %v302 = vmul.f32 %v177, %v300
    %304 = vrot.lane.b32.xlu0 %v302, 112
    %v305 = vpop.permute.xlu0 %304
    %v307 = vsel %vm270, %v305, 0.0
    %308 = vadd.xlane.f32.xlu0 %v307
    %v309 = vpop.xlane.xlu0 %308
    %311 = vrot.lane.b32.xlu0 %v269, 112
    %v312 = vpop.permute.xlu0 %311
    %v314 = vsel %vm270, %v312, 0.0
    %315 = vadd.xlane.f32.xlu0 %v314
    %v316 = vpop.xlane.xlu0 %315
    %v317 = vmax.f32 %v309, %v316
    %v318 = vsub.f32 %v309, %v317
    %v319 = vmul.f32 %v318, 1.442695
    %v320 = vpow.pop %v319
    %v321 = vsub.f32 %v316, %v317
    %v322 = vmul.f32 %v321, 1.442695
    %v323 = vpow.pop %v322
    %v324 = vadd.f32 %v320, %v323
    %v325 = vrcp.pop %v324
    %v326 = vmul.f32 %v320, %v325
    %v327 = vmul.f32 %v326, %v262
    %v328 = vmul.f32 %v323, %v325
    %v329 = vmul.f32 %v328, %v262
    %331 = vrot.lane.b32.xlu0 %v329, 112
    %v332 = vpop.permute.xlu0 %331
    %v334 = vadd.f32 %v327, %v332
    %336 = vrot.lane.b32.xlu0 %v177, 96
    %v337 = vpop.permute.xlu0 %336
    %v339 = vmul.f32 %v262, %v337
    %v340 = vsel %vm270, %v339, 0.0
    %341 = vadd.xlane.f32.xlu0 %v340
    %v342 = vpop.xlane.xlu0 %341
    %343 = vrot.lane.b32.xlu0 %v177, 80
    %v344 = vpop.permute.xlu0 %343
    %v346 = vmul.f32 %v262, %v344
    %v347 = vsel %vm270, %v346, 0.0
    %348 = vadd.xlane.f32.xlu0 %v347
    %v349 = vpop.xlane.xlu0 %348
    %v350 = vmax.f32 %v342, %v349
    %v351 = vsub.f32 %v342, %v350
    %v352 = vmul.f32 %v351, 1.442695
    %v353 = vpow.pop %v352
    %v354 = vsub.f32 %v349, %v350
    %v355 = vmul.f32 %v354, 1.442695
    %v356 = vpow.pop %v355
    %v357 = vadd.f32 %v353, %v356
    %v358 = vrcp.pop %v357
    %v359 = vmul.f32 %v353, %v358
    %v360 = vmul.f32 %v359, %v177
    %v361 = vmul.f32 %v356, %v358
    %v362 = vmul.f32 %v361, %v177
    %364 = vrot.lane.b32.xlu0 %v362, 112
    %v365 = vpop.permute.xlu0 %364
    %v367 = vadd.f32 %v360, %v365
    %368 = vrot.lane.b32.xlu0 %v177, 112
    %v369 = vpop.permute.xlu0 %368
    %v371 = vmul.f32 %v262, %v369
    %373 = vrot.lane.b32.xlu0 %v371, 112
    %v374 = vpop.permute.xlu0 %373
    %v376 = vsel %vm270, %v374, 0.0
    %377 = vadd.xlane.f32.xlu0 %v376
    %v378 = vpop.xlane.xlu0 %377
    %380 = vrot.lane.b32.xlu0 %v339, 112
    %v381 = vpop.permute.xlu0 %380
    %v383 = vsel %vm270, %v381, 0.0
    %384 = vadd.xlane.f32.xlu0 %v383
    %v385 = vpop.xlane.xlu0 %384
    %v386 = vmax.f32 %v378, %v385
    %v387 = vsub.f32 %v378, %v386
    %v388 = vmul.f32 %v387, 1.442695
    %v389 = vpow.pop %v388
    %v390 = vsub.f32 %v385, %v386
    %v391 = vmul.f32 %v390, 1.442695
    %v392 = vpow.pop %v391
    %v393 = vadd.f32 %v389, %v392
    %v394 = vrcp.pop %v393
    %v395 = vmul.f32 %v389, %v394
    %v396 = vmul.f32 %v395, %v177
    %v397 = vmul.f32 %v392, %v394
    %v398 = vmul.f32 %v397, %v177
    %400 = vrot.lane.b32.xlu0 %v398, 112
    %v401 = vpop.permute.xlu0 %400
    %v403 = vadd.f32 %v396, %v401
    %405 = vrot.lane.b32.xlu0 %v298, 64
    %v406 = vpop.permute.xlu0 %405
    %408 = vst.msk [vmem:[#allocation2] sm:$0x3] %vm270, %v406
    %410 = vrot.lane.b32.xlu0 %v334, 80
    %v411 = vpop.permute.xlu0 %410
    %vm413 = vcmask 255104
    %414 = vst.msk [vmem:[#allocation2] sm:$0x3] %vm413, %v411
    %416 = vrot.lane.b32.xlu0 %v367, 96
    %v417 = vpop.permute.xlu0 %416
    %vm419 = vcmask 386304
    %420 = vst.msk [vmem:[#allocation2] sm:$0x3] %vm419, %v417
    %422 = vrot.lane.b32.xlu0 %v403, 112
    %v423 = vpop.permute.xlu0 %422
    %vm425 = vcmask 517504
    %426 = vst.msk [vmem:[#allocation2] sm:$0x3] %vm425, %v423
    %v427 = vld [vmem:[#allocation2] sm:$0x3]
    %v428 = vld [vmem:[#allocation11] sm:$0xff]
    %v429 = vld [vmem:[#allocation11 + $0x8] sm:$0xff]
    %v430 = vld [vmem:[#allocation11 + $0x10] sm:$0xff]
    %v431 = vld [vmem:[#allocation11 + $0x18] sm:$0xff]
    %v432 = vld [vmem:[#allocation11 + $0x20] sm:$0xff]
    %v433 = vld [vmem:[#allocation11 + $0x28] sm:$0xff]
    %v434 = vld [vmem:[#allocation11 + $0x30] sm:$0xff]
    %v435 = vld [vmem:[#allocation11 + $0x38] sm:$0xff]
    %v436 = vld [vmem:[%s7] sm:$0x1]
    %v438 = vlaneseq
    %v439 = vshrl.u32 %v438, 7
    %v440 = vsub.s32 0, %v439
    %v441 = vrot.slane %v436, %v440
    %vm443 = vcmask 523264
    %v445 = vsel %vm443, %v427, 0
    %447 = vmatprep.subr.mxu0 0.0
    %448 = vmatpush1.msra.mxu0 0.0
    %449 = vmatprep.subr.mxu0 0.0
    %450 = vmatpush1.msra.mxu0 0.0
    %451 = vmatprep.subr.mxu0 0.0
    %452 = vmatpush1.msra.mxu0 0.0
    %453 = vmatprep.subr.mxu0 0.0
    %454 = vmatpush1.msra.mxu0 0.0
    %455 = vmatprep.subr.mxu0 0.0
    %456 = vmatpush1.msra.mxu0 0.0
    %457 = vmatprep.subr.mxu0 0.0
    %458 = vmatpush1.msra.mxu0 0.0
    %459 = vmatprep.subr.mxu0 0.0
    %460 = vmatpush1.msra.mxu0 0.0
    %461 = vmatprep.subr.mxu0 0.0
    %462 = vmatpush1.msra.mxu0 0.0
    %463 = vmatprep.subr.mxu0 0.0
    %464 = vmatpush1.msra.mxu0 %v435
    %465 = vmatprep.subr.mxu0 0.0
    %466 = vmatpush1.msra.mxu0 %v434
    %467 = vmatprep.subr.mxu0 0.0
    %468 = vmatpush1.msra.mxu0 %v433
    %469 = vmatprep.subr.mxu0 0.0
    %470 = vmatpush1.msra.mxu0 %v432
    %471 = vmatprep.subr.mxu0 0.0
    %472 = vmatpush1.msra.mxu0 %v431
    %473 = vmatprep.subr.mxu0 0.0
    %474 = vmatpush1.msra.mxu0 %v430
    %475 = vmatprep.subr.mxu0 0.0
    %476 = vmatpush1.msra.mxu0 %v429
    %477 = vmatprep.subr.mxu0 0.0
    %478 = vmatpush1.msra.mxu0 %v428
    %479 = vmatprep.subr.mxu0 0.0
    %480 = vmatpush2.msra.mxu0 0.0
    %481 = vmatprep.subr.mxu0 0.0
    %482 = vmatpush2.msra.mxu0 0.0
    %483 = vmatprep.subr.mxu0 0.0
    %484 = vmatpush2.msra.mxu0 0.0
    %485 = vmatprep.subr.mxu0 0.0
    %486 = vmatpush2.msra.mxu0 0.0
    %487 = vmatprep.subr.mxu0 0.0
    %488 = vmatpush2.msra.mxu0 0.0
    %489 = vmatprep.subr.mxu0 0.0
    %490 = vmatpush2.msra.mxu0 0.0
    %491 = vmatprep.subr.mxu0 0.0
    %492 = vmatpush2.msra.mxu0 0.0
    %493 = vmatprep.subr.mxu0 0.0
    %494 = vmatpush2.msra.mxu0 0.0
    %495 = vmatprep.subr.mxu0 0.0
    %496 = vmatpush2.msra.mxu0 0.0
    %497 = vmatprep.subr.mxu0 0.0
    %498 = vmatpush2.msra.mxu0 0.0
    %499 = vmatprep.subr.mxu0 0.0
    %500 = vmatpush2.msra.mxu0 0.0
    %501 = vmatprep.subr.mxu0 0.0
    %502 = vmatpush2.msra.mxu0 0.0
    %503 = vmatprep.subr.mxu0 0.0
    %504 = vmatpush2.msra.mxu0 0.0
    %505 = vmatprep.subr.mxu0 0.0
    %506 = vmatpush2.msra.mxu0 0.0
    %507 = vmatprep.subr.mxu0 0.0
    %508 = vmatpush2.msra.mxu0 0.0
    %509 = vmatprep.subr.mxu0 0.0
    %510 = vmatpush2.msra.mxu0 0.0
    %511 = vmatprep.mubr.f32.mxu0 0.0
    %512 = vmatmul.mubr.f32.gmra.mxu0 %v445
    %v513 = vpop.f32.mrf.mxu0
    %v514 = vadd.f32 %v441, %v513
    %v515 = vpop.f32.mrf.mxu0
    %516 = vdwg.mxu0
    %517 = vst [vmem:[#allocation12] sm:$0x3] %v514
    // Predicated region
    $region54: #{tpu_custom_call.1} parent=1 // pred_check
      _
    $region55: #{tpu_custom_call.1} parent=1 // pred_check_branch
      %519 = sbr.rel (0) target = $region57
    $region56: #{tpu_custom_call.1} parent=1 // pred_region
      %s521 = ssub.s32 32, 32
      %522 = vsyncadd [#allocation5], %s521
      %s524 = sshll.u32 [#allocation12], 4
      %s525 = int_to_ptr.vmem [resolvable:$true] %s524
      %527 = dma.vmem_to_hbm [thread:$0]  %s525, 32, %s8, [#allocation5]
    $region57: #{tpu_custom_call.1} parent=1 // pred_fallthru
      _
    // Predicated region
    $region58: #{tpu_custom_call.1} parent=1 // pred_check
      _
    $region59: #{tpu_custom_call.1} parent=1 // pred_check_branch
      %529 = sbr.rel (0) target = $region61
    $region60: #{tpu_custom_call.1} parent=1 // pred_region
      %530 = dma.done [#allocation5], 32
    $region61: #{tpu_custom_call.1} parent=1 // pred_fallthru
      _
    %531 = vsyncpa [#allocation4], 1
    %532 = vsyncpa [#allocation7], 1
    %533 = vsyncpa [#allocation10], 1
    %534 = vsyncpa [#allocation5], 1

// kernel: tpu_custom_call.1
$region0: #{tpu_custom_call.1}
  #allocation0 [shape = 'u32[]', space=smem, size = 0x4, offset = 0x4, fixed_abs, tag = 'smem constant byte address 0x4 - core index']
  #allocation1 [shape = 'u32[144,128]{1,0:T(1,128)}', space=vmem, size = 0x12000, scoped, tag = 'internal scratch']
  #allocation2 [shape = 'f32[2,64]{1,0:T(2,128)}', space=vmem, size = 0x400, scoped, tag = 'scratch operand']
  %s0 = inlined_call_operand.hbm [shape: f32[2,32], index: 0, kind: input, shape index: {}]
  %s1 = inlined_call_operand.hbm [shape: f32[2,32], index: 1, kind: input, shape index: {}]
  %s2 = inlined_call_operand.hbm [shape: f32[32,96], index: 2, kind: input, shape index: {}]
  %s3 = inlined_call_operand.vmem [shape: f32[1,96], index: 3, kind: input, shape index: {}]
  %s4 = inlined_call_operand.hbm [shape: f32[32,96], index: 4, kind: input, shape index: {}]
  %s5 = inlined_call_operand.vmem [shape: f32[1,96], index: 5, kind: input, shape index: {}]
  %s6 = inlined_call_operand.hbm [shape: f32[64,128], index: 6, kind: input, shape index: {}]
  %s7 = inlined_call_operand.vmem [shape: f32[1,128], index: 7, kind: input, shape index: {}]
  %s8 = inlined_call_operand.hbm [shape: f32[2,128], index: 8, kind: output, shape index: {}]
  %s9 = sld [smem:[#allocation0]]
  $region62: #{tpu_custom_call.1} parent=0
    _
  %s11 = ssub.s32 1, %s9
  %s12 = scalar_select 0, %s11, %s9
  $region1: #{tpu_custom_call.1} parent=0
    #allocation3 [shape = 'u8[1024]{0}', space=vmem, size = 0x400, scoped, tag = 'input window, operand 0, single buffered']
    #allocation4 [shape = 's32[1]{0}', space=sflag, size = 0x4, scoped, tag = 'scoped memory for tpu_custom_call.1']
    #allocation5 [shape = 's32[1]{0}', space=sflag, size = 0x4, scoped, tag = 'scoped memory for tpu_custom_call.1']
    #allocation6 [shape = 'u8[1024]{0}', space=vmem, size = 0x400, scoped, tag = 'input window, operand 1, single buffered']
    #allocation7 [shape = 's32[1]{0}', space=sflag, size = 0x4, scoped, tag = 'scoped memory for tpu_custom_call.1']
    #allocation8 [shape = 'u8[16384]{0}', space=vmem, size = 0x4000, scoped, tag = 'input window, operand 2, single buffered']
    #allocation9 [shape = 'u8[16384]{0}', space=vmem, size = 0x4000, scoped, tag = 'input window, operand 4, single buffered']
    #allocation10 [shape = 's32[1]{0}', space=sflag, size = 0x4, scoped, tag = 'scoped memory for tpu_custom_call.1']
    #allocation11 [shape = 'u8[32768]{0}', space=vmem, size = 0x8000, scoped, tag = 'input window, operand 6, single buffered']
    #allocation12 [shape = 'u8[1024]{0}', space=vmem, size = 0x400, scoped, tag = 'output window, operand 0, single buffered']
    %13 = vsyncpa [#allocation4], 0
    %14 = vsyncpa [#allocation7], 0
    %15 = vsyncpa [#allocation10], 0
    %16 = vsyncpa [#allocation5], 0
    // Predicated region
    $region2: #{tpu_custom_call.1} parent=1 // pred_check
      _
    $region3: #{tpu_custom_call.1} parent=1 // pred_check_branch
      %18 = sbr.rel (0) target = $region5
    $region4: #{tpu_custom_call.1} parent=1 // pred_region
      %s20 = ssub.s32 32, 32
      %21 = vsyncadd [#allocation4], %s20
      %s23 = sshll.u32 [#allocation3], 4
      %s24 = int_to_ptr.vmem [resolvable:$true] %s23
      %26 = dma.hbm_to_vmem [thread:$0]  %s0, 32, %s24, [#allocation4]
    $region5: #{tpu_custom_call.1} parent=1 // pred_fallthru
      _
    // Predicated region
    $region6: #{tpu_custom_call.1} parent=1 // pred_check
      _
    $region7: #{tpu_custom_call.1} parent=1 // pred_check_branch
      %28 = sbr.rel (0) target = $region9
    $region8: #{tpu_custom_call.1} parent=1 // pred_region
      %s30 = ssub.s32 32, 32
      %31 = vsyncadd [#allocation7], %s30
      %s33 = sshll.u32 [#allocation6], 4
      %s34 = int_to_ptr.vmem [resolvable:$true] %s33
      %36 = dma.hbm_to_vmem [thread:$0]  %s1, 32, %s34, [#allocation7]
    $region9: #{tpu_custom_call.1} parent=1 // pred_fallthru
      _
    // Predicated region
    $region10: #{tpu_custom_call.1} parent=1 // pred_check
      _
    $region11: #{tpu_custom_call.1} parent=1 // pred_check_branch
      %38 = sbr.rel (0) target = $region13
    $region12: #{tpu_custom_call.1} parent=1 // pred_region
      %s40 = ssub.s32 512, 512
      %41 = vsyncadd [#allocation7], %s40
      %s42 = sshll.u32 [#allocation8], 4
      %s43 = int_to_ptr.vmem [resolvable:$true] %s42
      %48 = dma.hbm_to_vmem [thread:$0]  %s2, 512, %s43, [#allocation7], 128, 128, 8
    $region13: #{tpu_custom_call.1} parent=1 // pred_fallthru
      _
    // Predicated region
    $region14: #{tpu_custom_call.1} parent=1 // pred_check
      _
    $region15: #{tpu_custom_call.1} parent=1 // pred_check_branch
      %50 = sbr.rel (0) target = $region17
    $region16: #{tpu_custom_call.1} parent=1 // pred_region
      _
    $region17: #{tpu_custom_call.1} parent=1 // pred_fallthru
      _
    // Predicated region
    $region18: #{tpu_custom_call.1} parent=1 // pred_check
      _
    $region19: #{tpu_custom_call.1} parent=1 // pred_check_branch
      %52 = sbr.rel (0) target = $region21
    $region20: #{tpu_custom_call.1} parent=1 // pred_region
      %s54 = ssub.s32 512, 512
      %55 = vsyncadd [#allocation10], %s54
      %s56 = sshll.u32 [#allocation9], 4
      %s57 = int_to_ptr.vmem [resolvable:$true] %s56
      %62 = dma.hbm_to_vmem [thread:$0]  %s4, 512, %s57, [#allocation10], 128, 128, 8
    $region21: #{tpu_custom_call.1} parent=1 // pred_fallthru
      _
    // Predicated region
    $region22: #{tpu_custom_call.1} parent=1 // pred_check
      _
    $region23: #{tpu_custom_call.1} parent=1 // pred_check_branch
      %64 = sbr.rel (0) target = $region25
    $region24: #{tpu_custom_call.1} parent=1 // pred_region
      _
    $region25: #{tpu_custom_call.1} parent=1 // pred_fallthru
      _
    // Predicated region
    $region26: #{tpu_custom_call.1} parent=1 // pred_check
      _
    $region27: #{tpu_custom_call.1} parent=1 // pred_check_branch
      %66 = sbr.rel (0) target = $region29
    $region28: #{tpu_custom_call.1} parent=1 // pred_region
      %s68 = ssub.s32 1024, 1024
      %69 = vsyncadd [#allocation10], %s68
      %s70 = sshll.u32 [#allocation11], 4
      %s71 = int_to_ptr.vmem [resolvable:$true] %s70
      %76 = dma.hbm_to_vmem [thread:$0]  %s6, 1024, %s71, [#allocation10], 128, 128, 8
    $region29: #{tpu_custom_call.1} parent=1 // pred_fallthru
      _
    // Predicated region
    $region30: #{tpu_custom_call.1} parent=1 // pred_check
      _
    $region31: #{tpu_custom_call.1} parent=1 // pred_check_branch
      %78 = sbr.rel (0) target = $region33
    $region32: #{tpu_custom_call.1} parent=1 // pred_region
      _
    $region33: #{tpu_custom_call.1} parent=1 // pred_fallthru
      _
    // Predicated region
    $region34: #{tpu_custom_call.1} parent=1 // pred_check
      _
    $region35: #{tpu_custom_call.1} parent=1 // pred_check_branch
      %80 = sbr.rel (0) target = $region37
    $region36: #{tpu_custom_call.1} parent=1 // pred_region
      %81 = dma.done [#allocation4], 32
    $region37: #{tpu_custom_call.1} parent=1 // pred_fallthru
      _
    // Predicated region
    $region38: #{tpu_custom_call.1} parent=1 // pred_check
      _
    $region39: #{tpu_custom_call.1} parent=1 // pred_check_branch
      %83 = sbr.rel (0) target = $region41
    $region40: #{tpu_custom_call.1} parent=1 // pred_region
      %84 = dma.done [#allocation7], 32
    $region41: #{tpu_custom_call.1} parent=1 // pred_fallthru
      _
    // Predicated region
    $region42: #{tpu_custom_call.1} parent=1 // pred_check
      _
    $region43: #{tpu_custom_call.1} parent=1 // pred_check_branch
      %86 = sbr.rel (0) target = $region45
    $region44: #{tpu_custom_call.1} parent=1 // pred_region
      %87 = dma.done [#allocation7], 512
    $region45: #{tpu_custom_call.1} parent=1 // pred_fallthru
      _
    // Predicated region
    $region46: #{tpu_custom_call.1} parent=1 // pred_check
      _
    $region47: #{tpu_custom_call.1} parent=1 // pred_check_branch
      %89 = sbr.rel (0) target = $region49
    $region48: #{tpu_custom_call.1} parent=1 // pred_region
      %90 = dma.done [#allocation10], 512
    $region49: #{tpu_custom_call.1} parent=1 // pred_fallthru
      _
    // Predicated region
    $region50: #{tpu_custom_call.1} parent=1 // pred_check
      _
    $region51: #{tpu_custom_call.1} parent=1 // pred_check_branch
      %92 = sbr.rel (0) target = $region53
    $region52: #{tpu_custom_call.1} parent=1 // pred_region
      %93 = dma.done [#allocation10], 1024
    $region53: #{tpu_custom_call.1} parent=1 // pred_fallthru
      _
    %v94 = vld [vmem:[#allocation3] sm:$0x3]
    %v95 = vld [vmem:[#allocation8] sm:$0xff]
    %v96 = vld [vmem:[#allocation8 + $0x8] sm:$0xff]
    %v97 = vld [vmem:[#allocation8 + $0x10] sm:$0xff]
    %v98 = vld [vmem:[#allocation8 + $0x18] sm:$0xff]
    %v99 = vld [vmem:[%s3] sm:$0x1]
    %v101 = vlaneseq
    %v102 = vshrl.u32 %v101, 7
    %v103 = vsub.s32 0, %v102
    %v104 = vrot.slane %v99, %v103
    %vm106 = vcmask 261120
    %v108 = vsel %vm106, %v94, 0
    %110 = vmatprep.subr.mxu0 0.0
    %111 = vmatpush1.msra.mxu0 0.0
    %112 = vmatprep.subr.mxu0 0.0
    %113 = vmatpush1.msra.mxu0 0.0
    %114 = vmatprep.subr.mxu0 0.0
    %115 = vmatpush1.msra.mxu0 0.0
    %116 = vmatprep.subr.mxu0 0.0
    %117 = vmatpush1.msra.mxu0 0.0
    %118 = vmatprep.subr.mxu0 0.0
    %119 = vmatpush1.msra.mxu0 0.0
    %120 = vmatprep.subr.mxu0 0.0
    %121 = vmatpush1.msra.mxu0 0.0
    %122 = vmatprep.subr.mxu0 0.0
    %123 = vmatpush1.msra.mxu0 0.0
    %124 = vmatprep.subr.mxu0 0.0
    %125 = vmatpush1.msra.mxu0 0.0
    %126 = vmatprep.subr.mxu0 0.0
    %127 = vmatpush1.msra.mxu0 0.0
    %128 = vmatprep.subr.mxu0 0.0
    %129 = vmatpush1.msra.mxu0 0.0
    %130 = vmatprep.subr.mxu0 0.0
    %131 = vmatpush1.msra.mxu0 0.0
    %132 = vmatprep.subr.mxu0 0.0
    %133 = vmatpush1.msra.mxu0 0.0
    %134 = vmatprep.subr.mxu0 0.0
    %135 = vmatpush1.msra.mxu0 %v98
    %136 = vmatprep.subr.mxu0 0.0
    %137 = vmatpush1.msra.mxu0 %v97
    %138 = vmatprep.subr.mxu0 0.0
    %139 = vmatpush1.msra.mxu0 %v96
    %140 = vmatprep.subr.mxu0 0.0
    %141 = vmatpush1.msra.mxu0 %v95
    %142 = vmatprep.subr.mxu0 0.0
    %143 = vmatpush2.msra.mxu0 0.0
    %144 = vmatprep.subr.mxu0 0.0
    %145 = vmatpush2.msra.mxu0 0.0
    %146 = vmatprep.subr.mxu0 0.0
    %147 = vmatpush2.msra.mxu0 0.0
    %148 = vmatprep.subr.mxu0 0.0
    %149 = vmatpush2.msra.mxu0 0.0
    %150 = vmatprep.subr.mxu0 0.0
    %151 = vmatpush2.msra.mxu0 0.0
    %152 = vmatprep.subr.mxu0 0.0
    %153 = vmatpush2.msra.mxu0 0.0
    %154 = vmatprep.subr.mxu0 0.0
    %155 = vmatpush2.msra.mxu0 0.0
    %156 = vmatprep.subr.mxu0 0.0
    %157 = vmatpush2.msra.mxu0 0.0
    %158 = vmatprep.subr.mxu0 0.0
    %159 = vmatpush2.msra.mxu0 0.0
    %160 = vmatprep.subr.mxu0 0.0
    %161 = vmatpush2.msra.mxu0 0.0
    %162 = vmatprep.subr.mxu0 0.0
    %163 = vmatpush2.msra.mxu0 0.0
    %164 = vmatprep.subr.mxu0 0.0
    %165 = vmatpush2.msra.mxu0 0.0
    %166 = vmatprep.subr.mxu0 0.0
    %167 = vmatpush2.msra.mxu0 0.0
    %168 = vmatprep.subr.mxu0 0.0
    %169 = vmatpush2.msra.mxu0 0.0
    %170 = vmatprep.subr.mxu0 0.0
    %171 = vmatpush2.msra.mxu0 0.0
    %172 = vmatprep.subr.mxu0 0.0
    %173 = vmatpush2.msra.mxu0 0.0
    %174 = vmatprep.mubr.f32.mxu0 0.0
    %175 = vmatmul.mubr.f32.gmra.mxu0 %v108
    %v176 = vpop.f32.mrf.mxu0
    %v177 = vadd.f32 %v104, %v176
    %v178 = vpop.f32.mrf.mxu0
    %179 = vdwg.mxu0
    %v180 = vld [vmem:[#allocation6] sm:$0x3]
    %v181 = vld [vmem:[#allocation9] sm:$0xff]
    %v182 = vld [vmem:[#allocation9 + $0x8] sm:$0xff]
    %v183 = vld [vmem:[#allocation9 + $0x10] sm:$0xff]
    %v184 = vld [vmem:[#allocation9 + $0x18] sm:$0xff]
    %v185 = vld [vmem:[%s5] sm:$0x1]
    %v187 = vlaneseq
    %v188 = vshrl.u32 %v187, 7
    %v189 = vsub.s32 0, %v188
    %v190 = vrot.slane %v185, %v189
    %v193 = vsel %vm106, %v180, 0
    %195 = vmatprep.subr.mxu0 0.0
    %196 = vmatpush1.msra.mxu0 0.0
    %197 = vmatprep.subr.mxu0 0.0
    %198 = vmatpush1.msra.mxu0 0.0
    %199 = vmatprep.subr.mxu0 0.0
    %200 = vmatpush1.msra.mxu0 0.0
    %201 = vmatprep.subr.mxu0 0.0
    %202 = vmatpush1.msra.mxu0 0.0
    %203 = vmatprep.subr.mxu0 0.0
    %204 = vmatpush1.msra.mxu0 0.0
    %205 = vmatprep.subr.mxu0 0.0
    %206 = vmatpush1.msra.mxu0 0.0
    %207 = vmatprep.subr.mxu0 0.0
    %208 = vmatpush1.msra.mxu0 0.0
    %209 = vmatprep.subr.mxu0 0.0
    %210 = vmatpush1.msra.mxu0 0.0
    %211 = vmatprep.subr.mxu0 0.0
    %212 = vmatpush1.msra.mxu0 0.0
    %213 = vmatprep.subr.mxu0 0.0
    %214 = vmatpush1.msra.mxu0 0.0
    %215 = vmatprep.subr.mxu0 0.0
    %216 = vmatpush1.msra.mxu0 0.0
    %217 = vmatprep.subr.mxu0 0.0
    %218 = vmatpush1.msra.mxu0 0.0
    %219 = vmatprep.subr.mxu0 0.0
    %220 = vmatpush1.msra.mxu0 %v184
    %221 = vmatprep.subr.mxu0 0.0
    %222 = vmatpush1.msra.mxu0 %v183
    %223 = vmatprep.subr.mxu0 0.0
    %224 = vmatpush1.msra.mxu0 %v182
    %225 = vmatprep.subr.mxu0 0.0
    %226 = vmatpush1.msra.mxu0 %v181
    %227 = vmatprep.subr.mxu0 0.0
    %228 = vmatpush2.msra.mxu0 0.0
    %229 = vmatprep.subr.mxu0 0.0
    %230 = vmatpush2.msra.mxu0 0.0
    %231 = vmatprep.subr.mxu0 0.0
    %232 = vmatpush2.msra.mxu0 0.0
    %233 = vmatprep.subr.mxu0 0.0
    %234 = vmatpush2.msra.mxu0 0.0
    %235 = vmatprep.subr.mxu0 0.0
    %236 = vmatpush2.msra.mxu0 0.0
    %237 = vmatprep.subr.mxu0 0.0
    %238 = vmatpush2.msra.mxu0 0.0
    %239 = vmatprep.subr.mxu0 0.0
    %240 = vmatpush2.msra.mxu0 0.0
    %241 = vmatprep.subr.mxu0 0.0
    %242 = vmatpush2.msra.mxu0 0.0
    %243 = vmatprep.subr.mxu0 0.0
    %244 = vmatpush2.msra.mxu0 0.0
    %245 = vmatprep.subr.mxu0 0.0
    %246 = vmatpush2.msra.mxu0 0.0
    %247 = vmatprep.subr.mxu0 0.0
    %248 = vmatpush2.msra.mxu0 0.0
    %249 = vmatprep.subr.mxu0 0.0
    %250 = vmatpush2.msra.mxu0 0.0
    %251 = vmatprep.subr.mxu0 0.0
    %252 = vmatpush2.msra.mxu0 0.0
    %253 = vmatprep.subr.mxu0 0.0
    %254 = vmatpush2.msra.mxu0 0.0
    %255 = vmatprep.subr.mxu0 0.0
    %256 = vmatpush2.msra.mxu0 0.0
    %257 = vmatprep.subr.mxu0 0.0
    %258 = vmatpush2.msra.mxu0 0.0
    %259 = vmatprep.mubr.f32.mxu0 0.0
    %260 = vmatmul.mubr.f32.gmra.mxu0 %v193
    %v261 = vpop.f32.mrf.mxu0
    %v262 = vadd.f32 %v190, %v261
    %v263 = vpop.f32.mrf.mxu0
    %264 = vdwg.mxu0
    %266 = vrot.lane.b32.xlu0 %v262, 96
    %v267 = vpop.permute.xlu0 %266
    %v269 = vmul.f32 %v177, %v267
    %vm270 = vcmask 123904
    %v271 = vsel %vm270, %v269, 0.0
    %272 = vadd.xlane.f32.xlu0 %v271
    %v273 = vpop.xlane.xlu0 %272
    %274 = vrot.lane.b32.xlu0 %v262, 80
    %v275 = vpop.permute.xlu0 %274
    %v277 = vmul.f32 %v177, %v275
    %v278 = vsel %vm270, %v277, 0.0
    %279 = vadd.xlane.f32.xlu0 %v278
    %v280 = vpop.xlane.xlu0 %279
    %v281 = vmax.f32 %v273, %v280
    %v282 = vsub.f32 %v273, %v281
    %v283 = vmul.f32 %v282, 1.442695
    %v284 = vpow.pop %v283
    %v285 = vsub.f32 %v280, %v281
    %v286 = vmul.f32 %v285, 1.442695
    %v287 = vpow.pop %v286
    %v288 = vadd.f32 %v284, %v287
    %v289 = vrcp.pop %v288
    %v290 = vmul.f32 %v284, %v289
    %v291 = vmul.f32 %v290, %v262
    %v292 = vmul.f32 %v287, %v289
    %v293 = vmul.f32 %v292, %v262
    %295 = vrot.lane.b32.xlu0 %v293, 112
    %v296 = vpop.permute.xlu0 %295
    %v298 = vadd.f32 %v291, %v296
    %299 = vrot.lane.b32.xlu0 %v262, 112
    %v300 = vpop.permute.xlu0 %299
    %v302 = vmul.f32 %v177, %v300
    %304 = vrot.lane.b32.xlu0 %v302, 112
    %v305 = vpop.permute.xlu0 %304
    %v307 = vsel %vm270, %v305, 0.0
    %308 = vadd.xlane.f32.xlu0 %v307
    %v309 = vpop.xlane.xlu0 %308
    %311 = vrot.lane.b32.xlu0 %v269, 112
    %v312 = vpop.permute.xlu0 %311
    %v314 = vsel %vm270, %v312, 0.0
    %315 = vadd.xlane.f32.xlu0 %v314
    %v316 = vpop.xlane.xlu0 %315
    %v317 = vmax.f32 %v309, %v316
    %v318 = vsub.f32 %v309, %v317
    %v319 = vmul.f32 %v318, 1.442695
    %v320 = vpow.pop %v319
    %v321 = vsub.f32 %v316, %v317
    %v322 = vmul.f32 %v321, 1.442695
    %v323 = vpow.pop %v322
    %v324 = vadd.f32 %v320, %v323
    %v325 = vrcp.pop %v324
    %v326 = vmul.f32 %v320, %v325
    %v327 = vmul.f32 %v326, %v262
    %v328 = vmul.f32 %v323, %v325
    %v329 = vmul.f32 %v328, %v262
    %331 = vrot.lane.b32.xlu0 %v329, 112
    %v332 = vpop.permute.xlu0 %331
    %v334 = vadd.f32 %v327, %v332
    %336 = vrot.lane.b32.xlu0 %v177, 96
    %v337 = vpop.permute.xlu0 %336
    %v339 = vmul.f32 %v262, %v337
    %v340 = vsel %vm270, %v339, 0.0
    %341 = vadd.xlane.f32.xlu0 %v340
    %v342 = vpop.xlane.xlu0 %341
    %343 = vrot.lane.b32.xlu0 %v177, 80
    %v344 = vpop.permute.xlu0 %343
    %v346 = vmul.f32 %v262, %v344
    %v347 = vsel %vm270, %v346, 0.0
    %348 = vadd.xlane.f32.xlu0 %v347
    %v349 = vpop.xlane.xlu0 %348
    %v350 = vmax.f32 %v342, %v349
    %v351 = vsub.f32 %v342, %v350
    %v352 = vmul.f32 %v351, 1.442695
    %v353 = vpow.pop %v352
    %v354 = vsub.f32 %v349, %v350
    %v355 = vmul.f32 %v354, 1.442695
    %v356 = vpow.pop %v355
    %v357 = vadd.f32 %v353, %v356
    %v358 = vrcp.pop %v357
    %v359 = vmul.f32 %v353, %v358
    %v360 = vmul.f32 %v359, %v177
    %v361 = vmul.f32 %v356, %v358
    %v362 = vmul.f32 %v361, %v177
    %364 = vrot.lane.b32.xlu0 %v362, 112
    %v365 = vpop.permute.xlu0 %364
    %v367 = vadd.f32 %v360, %v365
    %368 = vrot.lane.b32.xlu0 %v177, 112
    %v369 = vpop.permute.xlu0 %368
    %v371 = vmul.f32 %v262, %v369
    %373 = vrot.lane.b32.xlu0 %v371, 112
    %v374 = vpop.permute.xlu0 %373
    %v376 = vsel %vm270, %v374, 0.0
    %377 = vadd.xlane.f32.xlu0 %v376
    %v378 = vpop.xlane.xlu0 %377
    %380 = vrot.lane.b32.xlu0 %v339, 112
    %v381 = vpop.permute.xlu0 %380
    %v383 = vsel %vm270, %v381, 0.0
    %384 = vadd.xlane.f32.xlu0 %v383
    %v385 = vpop.xlane.xlu0 %384
    %v386 = vmax.f32 %v378, %v385
    %v387 = vsub.f32 %v378, %v386
    %v388 = vmul.f32 %v387, 1.442695
    %v389 = vpow.pop %v388
    %v390 = vsub.f32 %v385, %v386
    %v391 = vmul.f32 %v390, 1.442695
    %v392 = vpow.pop %v391
    %v393 = vadd.f32 %v389, %v392
    %v394 = vrcp.pop %v393
    %v395 = vmul.f32 %v389, %v394
    %v396 = vmul.f32 %v395, %v177
    %v397 = vmul.f32 %v392, %v394
    %v398 = vmul.f32 %v397, %v177
    %400 = vrot.lane.b32.xlu0 %v398, 112
    %v401 = vpop.permute.xlu0 %400
    %v403 = vadd.f32 %v396, %v401
    %405 = vrot.lane.b32.xlu0 %v298, 64
    %v406 = vpop.permute.xlu0 %405
    %408 = vst.msk [vmem:[#allocation2] sm:$0x3] %vm270, %v406
    %410 = vrot.lane.b32.xlu0 %v334, 80
    %v411 = vpop.permute.xlu0 %410
    %vm413 = vcmask 255104
    %414 = vst.msk [vmem:[#allocation2] sm:$0x3] %vm413, %v411
    %416 = vrot.lane.b32.xlu0 %v367, 96
    %v417 = vpop.permute.xlu0 %416
    %vm419 = vcmask 386304
    %420 = vst.msk [vmem:[#allocation2] sm:$0x3] %vm419, %v417
    %422 = vrot.lane.b32.xlu0 %v403, 112
    %v423 = vpop.permute.xlu0 %422
    %vm425 = vcmask 517504
    %426 = vst.msk [vmem:[#allocation2] sm:$0x3] %vm425, %v423
    %v427 = vld [vmem:[#allocation2] sm:$0x3]
    %v428 = vld [vmem:[#allocation11] sm:$0xff]
    %v429 = vld [vmem:[#allocation11 + $0x8] sm:$0xff]
    %v430 = vld [vmem:[#allocation11 + $0x10] sm:$0xff]
    %v431 = vld [vmem:[#allocation11 + $0x18] sm:$0xff]
    %v432 = vld [vmem:[#allocation11 + $0x20] sm:$0xff]
    %v433 = vld [vmem:[#allocation11 + $0x28] sm:$0xff]
    %v434 = vld [vmem:[#allocation11 + $0x30] sm:$0xff]
    %v435 = vld [vmem:[#allocation11 + $0x38] sm:$0xff]
    %v436 = vld [vmem:[%s7] sm:$0x1]
    %v438 = vlaneseq
    %v439 = vshrl.u32 %v438, 7
    %v440 = vsub.s32 0, %v439
    %v441 = vrot.slane %v436, %v440
    %vm443 = vcmask 523264
    %v445 = vsel %vm443, %v427, 0
    %447 = vmatprep.subr.mxu0 0.0
    %448 = vmatpush1.msra.mxu0 0.0
    %449 = vmatprep.subr.mxu0 0.0
    %450 = vmatpush1.msra.mxu0 0.0
    %451 = vmatprep.subr.mxu0 0.0
    %452 = vmatpush1.msra.mxu0 0.0
    %453 = vmatprep.subr.mxu0 0.0
    %454 = vmatpush1.msra.mxu0 0.0
    %455 = vmatprep.subr.mxu0 0.0
    %456 = vmatpush1.msra.mxu0 0.0
    %457 = vmatprep.subr.mxu0 0.0
    %458 = vmatpush1.msra.mxu0 0.0
    %459 = vmatprep.subr.mxu0 0.0
    %460 = vmatpush1.msra.mxu0 0.0
    %461 = vmatprep.subr.mxu0 0.0
    %462 = vmatpush1.msra.mxu0 0.0
    %463 = vmatprep.subr.mxu0 0.0
    %464 = vmatpush1.msra.mxu0 %v435
    %465 = vmatprep.subr.mxu0 0.0
    %466 = vmatpush1.msra.mxu0 %v434
    %467 = vmatprep.subr.mxu0 0.0
    %468 = vmatpush1.msra.mxu0 %v433
    %469 = vmatprep.subr.mxu0 0.0
    %470 = vmatpush1.msra.mxu0 %v432
    %471 = vmatprep.subr.mxu0 0.0
    %472 = vmatpush1.msra.mxu0 %v431
    %473 = vmatprep.subr.mxu0 0.0
    %474 = vmatpush1.msra.mxu0 %v430
    %475 = vmatprep.subr.mxu0 0.0
    %476 = vmatpush1.msra.mxu0 %v429
    %477 = vmatprep.subr.mxu0 0.0
    %478 = vmatpush1.msra.mxu0 %v428
    %479 = vmatprep.subr.mxu0 0.0
    %480 = vmatpush2.msra.mxu0 0.0
    %481 = vmatprep.subr.mxu0 0.0
    %482 = vmatpush2.msra.mxu0 0.0
    %483 = vmatprep.subr.mxu0 0.0
    %484 = vmatpush2.msra.mxu0 0.0
    %485 = vmatprep.subr.mxu0 0.0
    %486 = vmatpush2.msra.mxu0 0.0
    %487 = vmatprep.subr.mxu0 0.0
    %488 = vmatpush2.msra.mxu0 0.0
    %489 = vmatprep.subr.mxu0 0.0
    %490 = vmatpush2.msra.mxu0 0.0
    %491 = vmatprep.subr.mxu0 0.0
    %492 = vmatpush2.msra.mxu0 0.0
    %493 = vmatprep.subr.mxu0 0.0
    %494 = vmatpush2.msra.mxu0 0.0
    %495 = vmatprep.subr.mxu0 0.0
    %496 = vmatpush2.msra.mxu0 0.0
    %497 = vmatprep.subr.mxu0 0.0
    %498 = vmatpush2.msra.mxu0 0.0
    %499 = vmatprep.subr.mxu0 0.0
    %500 = vmatpush2.msra.mxu0 0.0
    %501 = vmatprep.subr.mxu0 0.0
    %502 = vmatpush2.msra.mxu0 0.0
    %503 = vmatprep.subr.mxu0 0.0
    %504 = vmatpush2.msra.mxu0 0.0
    %505 = vmatprep.subr.mxu0 0.0
    %506 = vmatpush2.msra.mxu0 0.0
    %507 = vmatprep.subr.mxu0 0.0
    %508 = vmatpush2.msra.mxu0 0.0
    %509 = vmatprep.subr.mxu0 0.0
    %510 = vmatpush2.msra.mxu0 0.0
    %511 = vmatprep.mubr.f32.mxu0 0.0
    %512 = vmatmul.mubr.f32.gmra.mxu0 %v445
    %v513 = vpop.f32.mrf.mxu0
    %v514 = vadd.f32 %v441, %v513
    %v515 = vpop.f32.mrf.mxu0
    %516 = vdwg.mxu0
    %517 = vst [vmem:[#allocation12] sm:$0x3] %v514
    // Predicated region
    $region54: #{tpu_custom_call.1} parent=1 // pred_check
      _
    $region55: #{tpu_custom_call.1} parent=1 // pred_check_branch
      %519 = sbr.rel (0) target = $region57
    $region56: #{tpu_custom_call.1} parent=1 // pred_region
      %s521 = ssub.s32 32, 32
      %522 = vsyncadd [#allocation5], %s521
      %s524 = sshll.u32 [#allocation12], 4
      %s525 = int_to_ptr.vmem [resolvable:$true] %s524
      %527 = dma.vmem_to_hbm [thread:$0]  %s525, 32, %s8, [#allocation5]
    $region57: #{tpu_custom_call.1} parent=1 // pred_fallthru
      _
    // Predicated region
    $region58: #{tpu_custom_call.1} parent=1 // pred_check
      _
    $region59: #{tpu_custom_call.1} parent=1 // pred_check_branch
      %529 = sbr.rel (0) target = $region61
    $region60: #{tpu_custom_call.1} parent=1 // pred_region
      %530 = dma.done [#allocation5], 32
    $region61: #{tpu_custom_call.1} parent=1 // pred_fallthru
      _
    %531 = vsyncpa [#allocation4], 1
    %532 = vsyncpa [#allocation7], 1
    %533 = vsyncpa [#allocation10], 1
    %534 = vsyncpa [#allocation5], 1

</llo_original>
